<compile_context>
chip_gen: v7x
topology: tpu7x:2x2x1
jax: 0.10.0
libtpu: 0.0.40
codegen_flags: <defaults>
</compile_context>

<pallas_src>
import numpy as np
import jax
import jax.numpy as jnp
from jax.experimental import pallas as pl
from jax.experimental.pallas import tpu as pltpu

# ----------------------- module hyper-parameters (mirror __init__) -----------------------
DIM = 32                       # dim
NUM_HEADS = 4                  # num_heads
HEAD_DIM = DIM // NUM_HEADS
SCALE = HEAD_DIM ** (-0.5)
LOG_SCALE = 512.0              # args.log_scale
RPE_QUANT = "bilinear_2.0_8"   # args.rpe_quant -> interp_method, max_value, num_points
RPE_DIM = 16                   # args.rpe_dim
INTERP_METHOD, MAX_VALUE, NUM_POINTS = RPE_QUANT.split("_")
MAX_VALUE = float(MAX_VALUE)
NUM_POINTS = int(NUM_POINTS)
assert INTERP_METHOD == "bilinear"   # trilinear interpolation for 5-D grid_sample

# ----------------------------------- example sizes ---------------------------------------
B, NQ, NK = 2, 16, 32


# ===================================== Pallas kernel ======================================
def attention_pallas(query_bqc, key_bkc, rpe, params):
    """query_bqc (B,nQ,C), key_bkc (B,nK,C), rpe (B,H,nQ,nK) -> x (B,nQ,C), attn (B,H,nQ,nK)."""
    B_, nQ, C = query_bqc.shape
    nK = key_bkc.shape[1]
    H, hd = NUM_HEADS, HEAD_DIM
    G = B_ * H                         # lane-group size: col = key*G + batch*H + head
    WIDE = nK * G                      # 256 -> lane-dense score / attn slab
    ROWS = B_ * nQ                     # 32
    XPAD = 128                         # lane-dense x output width (sliced back to C)
    f32 = jnp.float32
    assert nK & (nK - 1) == 0, "segmented roll-reduction assumes power-of-two nK"
    SEG_SHIFTS = tuple(G * (1 << t) for t in range(int(np.log2(nK))))   # (8,16,32,64,128)

    # ---------------- wrapper-side layout plumbing (free XLA work, review rec 2) ----------
    query_flat = query_bqc.reshape(ROWS, C)
    # K path: key^T with (key, batch, head)-interleaved lanes -> (C, WIDE)
    key_t_wide = jnp.broadcast_to(
        key_bkc.transpose(2, 1, 0)[:, :, :, None], (C, nK, B_, H)).reshape(C, WIDE)
    # V path: key rows with the same interleaving -> (WIDE, C)
    key_rows_wide = jnp.broadcast_to(
        key_bkc.transpose(1, 0, 2)[:, :, None, :], (nK, B_, H, C)).reshape(WIDE, C)

    eye_b = jnp.eye(B_, dtype=f32)
    rpe_perm = rpe.transpose(0, 2, 3, 1)                                    # (B,nQ,nK,H)
    rpe_wide = (rpe_perm[:, :, :, None, :]
                * eye_b[:, None, None, :, None]).reshape(ROWS, WIDE)        # 0 off-batch
    batch_mask = jnp.broadcast_to(
        eye_b[:, None, None, :, None], (B_, nQ, nK, B_, H)).reshape(ROWS, WIDE)

    # constant head-selector masks (built with numpy, passed as f32 inputs)
    row_h = np.arange(C) // hd                     # head owning each q/kv channel
    col_h = np.arange(WIDE) % H                    # head owning each wide lane
    kb_mask = jnp.asarray((row_h[:, None] == col_h[None, :]).astype(np.float32))   # (C,WIDE)
    vb_mask = jnp.asarray((col_h[:, None] == row_h[None, :]).astype(np.float32))   # (WIDE,C)

    # weights: scale/bias folded, H-tiled, output projection zero-padded to 128 lanes
    wq_t_s = params["wq"].T * SCALE                      # (C, C)
    bq_row = (params["bq"] * SCALE)[None, :]             # (1, C)
    wk_tiled = jnp.tile(params["wk"], (H, 1))            # (C, C)   rows h*hd+d = wk[d]
    bk_col = jnp.tile(params["bk"], H)[:, None]          # (C, 1)
    wv_t_tiled = jnp.tile(params["wv"].T, (1, H))        # (C, C)   cols h*hd+d = wv[d]
    bv_row = jnp.tile(params["bv"], H)[None, :]          # (1, C)
    wp_t_pad = jnp.zeros((C, XPAD), f32).at[:, :C].set(params["wp"].T)
    bp_pad = jnp.zeros((1, XPAD), f32).at[0, :C].set(params["bp"])

    operands = [query_flat, key_t_wide, key_rows_wide, rpe_wide, batch_mask,
                kb_mask, vb_mask,
                wq_t_s, bq_row, wk_tiled, bk_col, wv_t_tiled, bv_row, wp_t_pad, bp_pad]

    def kernel(q_ref, kt_ref, krows_ref, rpe_ref, bmask_ref, kbm_ref, vbm_ref,
               wq_ref, bq_ref, wk_ref, bk_ref, wv_ref, bv_ref, wp_ref, bp_ref,
               x_ref, attn_ref):

        def seg_reduce(x, op):
            # All-reduce over the nK keys of each (batch, head) lane coset.  With the
            # interleaved packing every full-axis rotation by a multiple of G stays
            # inside the coset, so 5 roll+combine steps replicate the segment
            # reduction to every lane (no masks, no selects, no seg_ones matmul).
            for shift in SEG_SHIFTS:
                x = op(x, pltpu.roll(x, shift, axis=1))
            return x

        # ---------------- batch-fused projections (scale & bias folded in wrapper) --------
        q_all = jnp.dot(q_ref[...], wq_ref[...], preferred_element_type=jnp.float32) \
            + bq_ref[...]                                                   # (ROWS, C)
        kb = kbm_ref[...] * (jnp.dot(wk_ref[...], kt_ref[...],
                                     preferred_element_type=jnp.float32)
                             + bk_ref[...])                                 # (C, WIDE)
        vb = vbm_ref[...] * (jnp.dot(krows_ref[...], wv_ref[...],
                                     preferred_element_type=jnp.float32)
                             + bv_ref[...])                                 # (WIDE, C)

        # ---------------- all batches x all heads in ONE scores matmul --------------------
        s = jnp.dot(q_all, kb, preferred_element_type=jnp.float32) + rpe_ref[...]

        # ---------------- per-(batch, head) segmented softmax, exact max ------------------
        m_seg = seg_reduce(s, jnp.maximum)
        p = jnp.exp(s - m_seg) * bmask_ref[...]           # zero cross-batch columns
        denom = seg_reduce(p, jnp.add) + (1.0 - bmask_ref[...])   # dead segments -> 1
        attn = p * pl.reciprocal(denom)                   # exact reciprocal
        attn_ref[...] = attn                              # lane-dense (ROWS, 256) store

        # ---------------- attn @ V and padded output projection ---------------------------
        av = jnp.dot(attn, vb, preferred_element_type=jnp.float32)          # (ROWS, C)
        x_ref[...] = jnp.dot(av, wp_ref[...], preferred_element_type=jnp.float32) \
            + bp_ref[...]                                 # lane-dense (ROWS, 128) store

    flops = 2 * (ROWS * C * C            # q projection
                 + C * C * WIDE          # Kb
                 + WIDE * C * C          # Vb
                 + ROWS * C * WIDE       # scores
                 + ROWS * WIDE * C       # attn @ V
                 + ROWS * C * XPAD)      # output projection
    transcendentals = ROWS * WIDE
    bytes_accessed = 4 * (sum(int(np.prod(a.shape)) for a in operands)
                          + ROWS * XPAD + ROWS * WIDE)

    vmem_spec = lambda: pl.BlockSpec(memory_space=pltpu.MemorySpace.VMEM)
    x_pad, attn_wide = pl.pallas_call(
        kernel,
        out_shape=[jax.ShapeDtypeStruct((ROWS, XPAD), f32),
                   jax.ShapeDtypeStruct((ROWS, WIDE), f32)],
        in_specs=[vmem_spec() for _ in operands],
        out_specs=[vmem_spec(), vmem_spec()],
        compiler_params=pltpu.CompilerParams(vmem_limit_bytes=32 * 1024 * 1024),
        cost_estimate=pl.CostEstimate(flops=flops, transcendentals=transcendentals,
                                      bytes_accessed=bytes_accessed),
    )(*operands)

    # wrapper-side un-plumbing (free): slice x lanes, pick the batch-diagonal of attn
    x_bqc = x_pad[:, :C].reshape(B_, nQ, C)
    attn5 = attn_wide.reshape(B_, nQ, nK, B_, H)
    attn = attn5[jnp.arange(B_), :, :, jnp.arange(B_), :].transpose(0, 3, 1, 2)
    return x_bqc, attn


# ============================= rpe construction (plain-JAX glue) ==========================
def rotz_batch(t):
    c, s = jnp.cos(t), jnp.sin(t)
    z, o = jnp.zeros_like(t), jnp.ones_like(t)
    R = jnp.stack([c, -s, z, s, c, z, z, z, o], axis=-1)
    return R.reshape(t.shape + (3, 3))


def grid_sample_trilinear(table_flat, grid_pts, P):
    """PyTorch F.grid_sample (5-D, mode='bilinear', align_corners=True, padding='zeros')."""
    x = (grid_pts[:, 0] + 1.0) * 0.5 * (P - 1)
    y = (grid_pts[:, 1] + 1.0) * 0.5 * (P - 1)
    z = (grid_pts[:, 2] + 1.0) * 0.5 * (P - 1)
    x0, y0, z0 = jnp.floor(x), jnp.floor(y), jnp.floor(z)
    out = jnp.zeros((grid_pts.shape[0], table_flat.shape[1]), jnp.float32)
    for dz in (0, 1):
        for dy in (0, 1):
            for dx in (0, 1):
                xi, yi, zi = x0 + dx, y0 + dy, z0 + dz
                w = (1.0 - jnp.abs(x - xi)) * (1.0 - jnp.abs(y - yi)) * (1.0 - jnp.abs(z - zi))
                inb = ((xi >= 0) & (xi < P) & (yi >= 0) & (yi < P) & (zi >= 0) & (zi < P))
                idx = (zi.astype(jnp.int32).clip(0, P - 1) * P
                       + yi.astype(jnp.int32).clip(0, P - 1)) * P \
                      + xi.astype(jnp.int32).clip(0, P - 1)
                vals = jnp.take(table_flat, idx, axis=0)          # (N, H)
                out = out + (w * inb.astype(jnp.float32))[:, None] * vals
    return out
# TODO(synk): grid_sample's data-dependent gather stays in plain JAX (no clean Pallas gather).


def compute_rpe(reference_point, reference_angle, xyz, cpb_params, coords_flat):
    B_, nQ = reference_point.shape[:2]
    nK = xyz.shape[1]
    R = rotz_batch(reference_angle) if reference_angle is not None else None

    # batch the 8 corner CPB MLPs into single einsums (review rec: compute_rpe dominates)
    w1 = jnp.stack([p[0] for p in cpb_params])                 # (8, RPE_DIM, 3)
    b1 = jnp.stack([p[1] for p in cpb_params])                 # (8, RPE_DIM)
    w2 = jnp.stack([p[2] for p in cpb_params])                 # (8, H, RPE_DIM)
    hidden = jax.nn.relu(jnp.einsum("pc,irc->ipr", coords_flat, w1) + b1[:, None, :])
    tables = jnp.einsum("ipr,ihr->iph", hidden, w2)            # (8, P^3, H)

    # all 8 corner delta fields at once
    deltas = (reference_point.transpose(2, 0, 1, 3)[:, :, :, None, :]
              - xyz[None, :, None, :, :])                      # (8, B, nQ, nK, 3)
    if R is not None:
        deltas = jnp.matmul(deltas, R[None])                   # rotate into box frame
    deltas = jnp.sign(deltas) * jnp.log2(jnp.abs(deltas) * LOG_SCALE + 1.0) / np.log2(8)
    delta_norm = (deltas / MAX_VALUE).reshape(8, -1, 3)        # (8, B*nQ*nK, 3)

    sampled = jax.vmap(grid_sample_trilinear, in_axes=(0, 0, None))(
        tables, delta_norm, NUM_POINTS)                        # (8, B*nQ*nK, H)
    rpe_flat = sampled.sum(axis=0)                             # (B*nQ*nK, H)
    return rpe_flat.reshape(B_, nQ, nK, NUM_HEADS).transpose(0, 3, 1, 2)


# =================================== full forward wrapper =================================
def global_share_cross_attention(query, key, reference_point, reference_angle, xyz,
                                 params, coords_flat):
    # matches:  key, query = key.permute(1,0,2), query.permute(1,0,2)
    key_bkc = jnp.transpose(key, (1, 0, 2))
    query_bqc = jnp.transpose(query, (1, 0, 2))
    rpe = compute_rpe(reference_point, reference_angle, xyz, params["cpb"], coords_flat)
    x_bqc, attn = attention_pallas(query_bqc, key_bkc, rpe, params)
    # attn_drop / proj_drop are identity (p = 0.0, eval mode)
    x = jnp.transpose(x_bqc, (1, 0, 2))            # .permute(1, 0, 2) -> (nQ, B, C)
    return x, attn


def reference_attention(query_bqc, key_bkc, rpe, params):
    """Pure-JAX replica of the attention half (for verification)."""
    B_, nQ, C = query_bqc.shape
    q = (query_bqc @ params["wq"].T + params["bq"]) * SCALE
    k = key_bkc @ params["wk"].T + params["bk"]
    v = key_bkc @ params["wv"].T + params["bv"]
    qh = q.reshape(B_, nQ, NUM_HEADS, HEAD_DIM).transpose(0, 2, 1, 3)
    attn = jnp.einsum("bhqd,bkd->bhqk", qh, k) + rpe
    attn = jax.nn.softmax(attn, axis=-1)
    x = jnp.einsum("bhqk,bkd->bhqd", attn, v)
    x = x.transpose(0, 2, 1, 3).reshape(B_, nQ, DIM)
    x = x @ params["wp"].T + params["bp"]
    return x.transpose(1, 0, 2), attn


# ================================= deterministic parameters ===============================
def init_params(key):
    ks = jax.random.split(key, 10 + 3 * 8)
    p = {
        "wq": 0.1 * jax.random.normal(ks[0], (DIM, DIM), jnp.float32),
        "bq": 0.1 * jax.random.normal(ks[1], (DIM,), jnp.float32),
        "wk": 0.1 * jax.random.normal(ks[2], (HEAD_DIM, DIM), jnp.float32),
        "bk": 0.1 * jax.random.normal(ks[3], (HEAD_DIM,), jnp.float32),
        "wv": 0.1 * jax.random.normal(ks[4], (HEAD_DIM, DIM), jnp.float32),
        "bv": 0.1 * jax.random.normal(ks[5], (HEAD_DIM,), jnp.float32),
        "wp": 0.1 * jax.random.normal(ks[6], (DIM, DIM), jnp.float32),
        "bp": 0.1 * jax.random.normal(ks[7], (DIM,), jnp.float32),
    }
    cpb = []
    for i in range(8):
        w1 = 0.5 * jax.random.normal(ks[10 + 3 * i + 0], (RPE_DIM, 3), jnp.float32)
        b1 = 0.5 * jax.random.normal(ks[10 + 3 * i + 1], (RPE_DIM,), jnp.float32)
        w2 = 0.5 * jax.random.normal(ks[10 + 3 * i + 2], (NUM_HEADS, RPE_DIM), jnp.float32)
        cpb.append((w1, b1, w2))
    p["cpb"] = cpb
    return p


def make_coords_flat():
    lin = jnp.linspace(-MAX_VALUE, MAX_VALUE, NUM_POINTS, dtype=jnp.float32)
    a, b, c = jnp.meshgrid(lin, lin, lin, indexing="ij")
    return jnp.stack([a, b, c], axis=-1).reshape(-1, 3)      # (P^3, 3)


# ========================================== main ==========================================
if __name__ == "__main__":
    root = jax.random.PRNGKey(0)
    kq, kk, krp, kang, kxyz, kpar = jax.random.split(root, 6)

    # PyTorch-convention inputs (seq-major query/key)
    query = jax.random.normal(kq, (NQ, B, DIM), jnp.float32)
    key = jax.random.normal(kk, (NK, B, DIM), jnp.float32)
    reference_point = jax.random.uniform(krp, (B, NQ, 8, 3), minval=-1.0, maxval=1.0)
    reference_angle = jax.random.uniform(kang, (B, NQ), minval=0.0, maxval=2.0 * np.pi)
    xyz = jax.random.uniform(kxyz, (B, NK, 3), minval=-1.0, maxval=1.0)

    params = init_params(kpar)
    coords_flat = make_coords_flat()

    x, attn = global_share_cross_attention(query, key, reference_point, reference_angle,
                                           xyz, params, coords_flat)
    x = jax.block_until_ready(x)
    attn = jax.block_until_ready(attn)

    # sanity check against a pure-JAX replica of the attention half
    # (exact per-head softmax max + exact reciprocal in the kernel; tolerance covers
    #  MXU-vs-XLA f32 matmul rounding differences)
    rpe = compute_rpe(reference_point, reference_angle, xyz, params["cpb"], coords_flat)
    x_ref, attn_ref = reference_attention(jnp.transpose(query, (1, 0, 2)),
                                          jnp.transpose(key, (1, 0, 2)), rpe, params)
    assert x.shape == (NQ, B, DIM) and attn.shape == (B, NUM_HEADS, NQ, NK)
    assert jnp.allclose(x, x_ref, atol=2e-3, rtol=2e-3)
    assert jnp.allclose(attn, attn_ref, atol=2e-3, rtol=2e-3)

    print("KERNEL_OK")
</pallas_src>

<mosaic_0001>
module attributes {stable_mosaic.version = 11 : i64} {
  func.func @kernel(%arg0: memref<32x32xf32, #tpu.memory_space<vmem>>, %arg1: memref<32x256xf32, #tpu.memory_space<vmem>>, %arg2: memref<256x32xf32, #tpu.memory_space<vmem>>, %arg3: memref<32x256xf32, #tpu.memory_space<vmem>>, %arg4: memref<32x256xf32, #tpu.memory_space<vmem>>, %arg5: memref<32x256xf32, #tpu.memory_space<vmem>>, %arg6: memref<256x32xf32, #tpu.memory_space<vmem>>, %arg7: memref<32x32xf32, #tpu.memory_space<vmem>>, %arg8: memref<1x32xf32, #tpu.memory_space<vmem>>, %arg9: memref<32x32xf32, #tpu.memory_space<vmem>>, %arg10: memref<32x1xf32, #tpu.memory_space<vmem>>, %arg11: memref<32x32xf32, #tpu.memory_space<vmem>>, %arg12: memref<1x32xf32, #tpu.memory_space<vmem>>, %arg13: memref<32x128xf32, #tpu.memory_space<vmem>>, %arg14: memref<1x128xf32, #tpu.memory_space<vmem>>, %arg15: memref<32x128xf32, #tpu.memory_space<vmem>>, %arg16: memref<32x256xf32, #tpu.memory_space<vmem>>) attributes {dimension_semantics = [], scalar_prefetch = 0 : i64, scratch_operands = 0 : i64, tpu.core_type = #tpu.core_type<tc>} {
    %c0 = arith.constant 0 : index
    %c0_0 = arith.constant 0 : index
    %0 = vector.load %arg0[%c0, %c0_0] : memref<32x32xf32, #tpu.memory_space<vmem>>, vector<32x32xf32>
    %c0_1 = arith.constant 0 : index
    %c0_2 = arith.constant 0 : index
    %1 = vector.load %arg7[%c0_1, %c0_2] : memref<32x32xf32, #tpu.memory_space<vmem>>, vector<32x32xf32>
    %cst = arith.constant dense<0.000000e+00> : vector<32x32xf32>
    %2 = tpu.matmul %0, %1, %cst {dimension_numbers = #tpu.dot_dimension_numbers<[1], [0], [0], [1], [0, 0, 1, 1], [], []>} : vector<32x32xf32>, vector<32x32xf32>, vector<32x32xf32> -> vector<32x32xf32>
    %c0_3 = arith.constant 0 : index
    %c0_4 = arith.constant 0 : index
    %3 = vector.load %arg8[%c0_3, %c0_4] : memref<1x32xf32, #tpu.memory_space<vmem>>, vector<1x32xf32>
    %4 = vector.broadcast %3 : vector<1x32xf32> to vector<32x32xf32>
    %5 = arith.addf %2, %4 : vector<32x32xf32>
    %c0_5 = arith.constant 0 : index
    %c0_6 = arith.constant 0 : index
    %6 = vector.load %arg5[%c0_5, %c0_6] : memref<32x256xf32, #tpu.memory_space<vmem>>, vector<32x256xf32>
    %c0_7 = arith.constant 0 : index
    %c0_8 = arith.constant 0 : index
    %7 = vector.load %arg9[%c0_7, %c0_8] : memref<32x32xf32, #tpu.memory_space<vmem>>, vector<32x32xf32>
    %c0_9 = arith.constant 0 : index
    %c0_10 = arith.constant 0 : index
    %8 = vector.load %arg1[%c0_9, %c0_10] : memref<32x256xf32, #tpu.memory_space<vmem>>, vector<32x256xf32>
    %cst_11 = arith.constant dense<0.000000e+00> : vector<32x256xf32>
    %9 = tpu.matmul %7, %8, %cst_11 {dimension_numbers = #tpu.dot_dimension_numbers<[1], [0], [0], [1], [0, 0, 1, 1], [], []>} : vector<32x32xf32>, vector<32x256xf32>, vector<32x256xf32> -> vector<32x256xf32>
    %c0_12 = arith.constant 0 : index
    %c0_13 = arith.constant 0 : index
    %10 = vector.load %arg10[%c0_12, %c0_13] : memref<32x1xf32, #tpu.memory_space<vmem>>, vector<32x1xf32>
    %11 = vector.broadcast %10 : vector<32x1xf32> to vector<32x256xf32>
    %12 = arith.addf %9, %11 : vector<32x256xf32>
    %13 = arith.mulf %6, %12 : vector<32x256xf32>
    %c0_14 = arith.constant 0 : index
    %c0_15 = arith.constant 0 : index
    %14 = vector.load %arg6[%c0_14, %c0_15] : memref<256x32xf32, #tpu.memory_space<vmem>>, vector<256x32xf32>
    %c0_16 = arith.constant 0 : index
    %c0_17 = arith.constant 0 : index
    %15 = vector.load %arg2[%c0_16, %c0_17] : memref<256x32xf32, #tpu.memory_space<vmem>>, vector<256x32xf32>
    %c0_18 = arith.constant 0 : index
    %c0_19 = arith.constant 0 : index
    %16 = vector.load %arg11[%c0_18, %c0_19] : memref<32x32xf32, #tpu.memory_space<vmem>>, vector<32x32xf32>
    %cst_20 = arith.constant dense<0.000000e+00> : vector<256x32xf32>
    %17 = tpu.matmul %15, %16, %cst_20 {dimension_numbers = #tpu.dot_dimension_numbers<[1], [0], [0], [1], [0, 0, 1, 1], [], []>} : vector<256x32xf32>, vector<32x32xf32>, vector<256x32xf32> -> vector<256x32xf32>
    %c0_21 = arith.constant 0 : index
    %c0_22 = arith.constant 0 : index
    %18 = vector.load %arg12[%c0_21, %c0_22] : memref<1x32xf32, #tpu.memory_space<vmem>>, vector<1x32xf32>
    %19 = vector.broadcast %18 : vector<1x32xf32> to vector<256x32xf32>
    %20 = arith.addf %17, %19 : vector<256x32xf32>
    %21 = arith.mulf %14, %20 : vector<256x32xf32>
    %cst_23 = arith.constant dense<0.000000e+00> : vector<32x256xf32>
    %22 = tpu.matmul %5, %13, %cst_23 {dimension_numbers = #tpu.dot_dimension_numbers<[1], [0], [0], [1], [0, 0, 1, 1], [], []>} : vector<32x32xf32>, vector<32x256xf32>, vector<32x256xf32> -> vector<32x256xf32>
    %c0_24 = arith.constant 0 : index
    %c0_25 = arith.constant 0 : index
    %23 = vector.load %arg3[%c0_24, %c0_25] : memref<32x256xf32, #tpu.memory_space<vmem>>, vector<32x256xf32>
    %24 = arith.addf %22, %23 : vector<32x256xf32>
    %c8_i32 = arith.constant 8 : i32
    %25 = tpu.dynamic_rotate %24 by %c8_i32 dim 1 : vector<32x256xf32>, i32 -> vector<32x256xf32>
    %26 = arith.maximumf %24, %25 : vector<32x256xf32>
    %c16_i32 = arith.constant 16 : i32
    %27 = tpu.dynamic_rotate %26 by %c16_i32 dim 1 : vector<32x256xf32>, i32 -> vector<32x256xf32>
    %28 = arith.maximumf %26, %27 : vector<32x256xf32>
    %c32_i32 = arith.constant 32 : i32
    %29 = tpu.dynamic_rotate %28 by %c32_i32 dim 1 : vector<32x256xf32>, i32 -> vector<32x256xf32>
    %30 = arith.maximumf %28, %29 : vector<32x256xf32>
    %c64_i32 = arith.constant 64 : i32
    %31 = tpu.dynamic_rotate %30 by %c64_i32 dim 1 : vector<32x256xf32>, i32 -> vector<32x256xf32>
    %32 = arith.maximumf %30, %31 : vector<32x256xf32>
    %c128_i32 = arith.constant 128 : i32
    %33 = tpu.dynamic_rotate %32 by %c128_i32 dim 1 : vector<32x256xf32>, i32 -> vector<32x256xf32>
    %34 = arith.maximumf %32, %33 : vector<32x256xf32>
    %35 = arith.subf %24, %34 : vector<32x256xf32>
    %36 = math.exp %35 : vector<32x256xf32>
    %c0_26 = arith.constant 0 : index
    %c0_27 = arith.constant 0 : index
    %37 = vector.load %arg4[%c0_26, %c0_27] : memref<32x256xf32, #tpu.memory_space<vmem>>, vector<32x256xf32>
    %38 = arith.mulf %36, %37 : vector<32x256xf32>
    %c8_i32_28 = arith.constant 8 : i32
    %39 = tpu.dynamic_rotate %38 by %c8_i32_28 dim 1 : vector<32x256xf32>, i32 -> vector<32x256xf32>
    %40 = arith.addf %38, %39 : vector<32x256xf32>
    %c16_i32_29 = arith.constant 16 : i32
    %41 = tpu.dynamic_rotate %40 by %c16_i32_29 dim 1 : vector<32x256xf32>, i32 -> vector<32x256xf32>
    %42 = arith.addf %40, %41 : vector<32x256xf32>
    %c32_i32_30 = arith.constant 32 : i32
    %43 = tpu.dynamic_rotate %42 by %c32_i32_30 dim 1 : vector<32x256xf32>, i32 -> vector<32x256xf32>
    %44 = arith.addf %42, %43 : vector<32x256xf32>
    %c64_i32_31 = arith.constant 64 : i32
    %45 = tpu.dynamic_rotate %44 by %c64_i32_31 dim 1 : vector<32x256xf32>, i32 -> vector<32x256xf32>
    %46 = arith.addf %44, %45 : vector<32x256xf32>
    %c128_i32_32 = arith.constant 128 : i32
    %47 = tpu.dynamic_rotate %46 by %c128_i32_32 dim 1 : vector<32x256xf32>, i32 -> vector<32x256xf32>
    %48 = arith.addf %46, %47 : vector<32x256xf32>
    %c0_33 = arith.constant 0 : index
    %c0_34 = arith.constant 0 : index
    %49 = vector.load %arg4[%c0_33, %c0_34] : memref<32x256xf32, #tpu.memory_space<vmem>>, vector<32x256xf32>
    %cst_35 = arith.constant 1.000000e+00 : f32
    %50 = vector.broadcast %cst_35 : f32 to vector<32x256xf32>
    %51 = arith.subf %50, %49 : vector<32x256xf32>
    %52 = arith.addf %48, %51 : vector<32x256xf32>
    %53 = tpu.reciprocal %52 : vector<32x256xf32> -> vector<32x256xf32>
    %54 = arith.mulf %38, %53 : vector<32x256xf32>
    %c0_36 = arith.constant 0 : index
    %c0_37 = arith.constant 0 : index
    %55 = vector.load %arg16[%c0_36, %c0_37] : memref<32x256xf32, #tpu.memory_space<vmem>>, vector<32x256xf32>
    tpu.vector_store %arg16[%c0_36, %c0_37], %54 {strides = array<i32>} : memref<32x256xf32, #tpu.memory_space<vmem>>, vector<32x256xf32>,
    %cst_38 = arith.constant dense<0.000000e+00> : vector<32x32xf32>
    %56 = tpu.matmul %54, %21, %cst_38 {dimension_numbers = #tpu.dot_dimension_numbers<[1], [0], [0], [1], [0, 0, 1, 1], [], []>} : vector<32x256xf32>, vector<256x32xf32>, vector<32x32xf32> -> vector<32x32xf32>
    %c0_39 = arith.constant 0 : index
    %c0_40 = arith.constant 0 : index
    %57 = vector.load %arg13[%c0_39, %c0_40] : memref<32x128xf32, #tpu.memory_space<vmem>>, vector<32x128xf32>
    %cst_41 = arith.constant dense<0.000000e+00> : vector<32x128xf32>
    %58 = tpu.matmul %56, %57, %cst_41 {dimension_numbers = #tpu.dot_dimension_numbers<[1], [0], [0], [1], [0, 0, 1, 1], [], []>} : vector<32x32xf32>, vector<32x128xf32>, vector<32x128xf32> -> vector<32x128xf32>
    %c0_42 = arith.constant 0 : index
    %c0_43 = arith.constant 0 : index
    %59 = vector.load %arg14[%c0_42, %c0_43] : memref<1x128xf32, #tpu.memory_space<vmem>>, vector<1x128xf32>
    %60 = vector.broadcast %59 : vector<1x128xf32> to vector<32x128xf32>
    %61 = arith.addf %58, %60 : vector<32x128xf32>
    %c0_44 = arith.constant 0 : index
    %c0_45 = arith.constant 0 : index
    %62 = vector.load %arg15[%c0_44, %c0_45] : memref<32x128xf32, #tpu.memory_space<vmem>>, vector<32x128xf32>
    tpu.vector_store %arg15[%c0_44, %c0_45], %61 {strides = array<i32>} : memref<32x128xf32, #tpu.memory_space<vmem>>, vector<32x128xf32>,
    return
  }
}

</mosaic_0001>

<llo_original>
// kernel: tpu_custom_call.1
$region0: #{tpu_custom_call.1}
  #allocation0 [shape = 'u32[]', space=smem, size = 0x4, offset = 0x4, fixed_abs, tag = 'smem constant byte address 0x4 - core index']
  #allocation1 [shape = 'u32[144,128]{1,0:T(1,128)}', space=vmem, size = 0x12000, scoped, tag = 'internal scratch']
  %s0 = inlined_call_operand.vmem [shape: f32[32,32], index: 0, kind: input, shape index: {}]
  %s1 = inlined_call_operand.vmem [shape: f32[32,256], index: 1, kind: input, shape index: {}]
  %s2 = inlined_call_operand.vmem [shape: f32[256,32], index: 2, kind: input, shape index: {}]
  %s3 = inlined_call_operand.vmem [shape: f32[32,256], index: 3, kind: input, shape index: {}]
  %s4 = inlined_call_operand.vmem [shape: f32[32,256], index: 4, kind: input, shape index: {}]
  %s5 = inlined_call_operand.vmem [shape: f32[32,256], index: 5, kind: input, shape index: {}]
  %s6 = inlined_call_operand.vmem [shape: f32[256,32], index: 6, kind: input, shape index: {}]
  %s7 = inlined_call_operand.vmem [shape: f32[32,32], index: 7, kind: input, shape index: {}]
  %s8 = inlined_call_operand.vmem [shape: f32[1,32], index: 8, kind: input, shape index: {}]
  %s9 = inlined_call_operand.vmem [shape: f32[32,32], index: 9, kind: input, shape index: {}]
  %s10 = inlined_call_operand.vmem [shape: f32[32,1], index: 10, kind: input, shape index: {}]
  %s11 = inlined_call_operand.vmem [shape: f32[32,32], index: 11, kind: input, shape index: {}]
  %s12 = inlined_call_operand.vmem [shape: f32[1,32], index: 12, kind: input, shape index: {}]
  %s13 = inlined_call_operand.vmem [shape: f32[32,128], index: 13, kind: input, shape index: {}]
  %s14 = inlined_call_operand.vmem [shape: f32[1,128], index: 14, kind: input, shape index: {}]
  %s15 = inlined_call_operand.hbm [shape: f32[32,128], index: 15, kind: output, shape index: {0}]
  %s16 = inlined_call_operand.hbm [shape: f32[32,256], index: 16, kind: output, shape index: {1}]
  %17 = xla_tuple %s15, %s16
  %s18 = sld [smem:[#allocation0]]
  $region78: #{tpu_custom_call.1} parent=0
    _
  %s20 = ssub.s32 1, %s18
  %s21 = scalar_select 0, %s20, %s18
  $region1: #{tpu_custom_call.1} parent=0
    #allocation2 [shape = 'u8[16384]{0}', space=vmem, size = 0x4000, scoped, tag = 'output window, operand 0, single buffered']
    #allocation3 [shape = 's32[1]{0}', space=sflag, size = 0x4, scoped, tag = 'scoped memory for tpu_custom_call.1']
    #allocation4 [shape = 'u8[32768]{0}', space=vmem, size = 0x8000, scoped, tag = 'output window, operand 1, single buffered']
    #allocation5 [shape = 's32[1]{0}', space=sflag, size = 0x4, scoped, tag = 'scoped memory for tpu_custom_call.1']
    %22 = vsyncpa [#allocation3], 0
    %23 = vsyncpa [#allocation5], 0
    // Predicated region
    $region2: #{tpu_custom_call.1} parent=1 // pred_check
      _
    $region3: #{tpu_custom_call.1} parent=1 // pred_check_branch
      %25 = sbr.rel (0) target = $region5
    $region4: #{tpu_custom_call.1} parent=1 // pred_region
      _
    $region5: #{tpu_custom_call.1} parent=1 // pred_fallthru
      _
    // Predicated region
    $region6: #{tpu_custom_call.1} parent=1 // pred_check
      _
    $region7: #{tpu_custom_call.1} parent=1 // pred_check_branch
      %27 = sbr.rel (0) target = $region9
    $region8: #{tpu_custom_call.1} parent=1 // pred_region
      _
    $region9: #{tpu_custom_call.1} parent=1 // pred_fallthru
      _
    // Predicated region
    $region10: #{tpu_custom_call.1} parent=1 // pred_check
      _
    $region11: #{tpu_custom_call.1} parent=1 // pred_check_branch
      %29 = sbr.rel (0) target = $region13
    $region12: #{tpu_custom_call.1} parent=1 // pred_region
      _
    $region13: #{tpu_custom_call.1} parent=1 // pred_fallthru
      _
    // Predicated region
    $region14: #{tpu_custom_call.1} parent=1 // pred_check
      _
    $region15: #{tpu_custom_call.1} parent=1 // pred_check_branch
      %31 = sbr.rel (0) target = $region17
    $region16: #{tpu_custom_call.1} parent=1 // pred_region
      _
    $region17: #{tpu_custom_call.1} parent=1 // pred_fallthru
      _
    // Predicated region
    $region18: #{tpu_custom_call.1} parent=1 // pred_check
      _
    $region19: #{tpu_custom_call.1} parent=1 // pred_check_branch
      %33 = sbr.rel (0) target = $region21
    $region20: #{tpu_custom_call.1} parent=1 // pred_region
      _
    $region21: #{tpu_custom_call.1} parent=1 // pred_fallthru
      _
    // Predicated region
    $region22: #{tpu_custom_call.1} parent=1 // pred_check
      _
    $region23: #{tpu_custom_call.1} parent=1 // pred_check_branch
      %35 = sbr.rel (0) target = $region25
    $region24: #{tpu_custom_call.1} parent=1 // pred_region
      _
    $region25: #{tpu_custom_call.1} parent=1 // pred_fallthru
      _
    // Predicated region
    $region26: #{tpu_custom_call.1} parent=1 // pred_check
      _
    $region27: #{tpu_custom_call.1} parent=1 // pred_check_branch
      %37 = sbr.rel (0) target = $region29
    $region28: #{tpu_custom_call.1} parent=1 // pred_region
      _
    $region29: #{tpu_custom_call.1} parent=1 // pred_fallthru
      _
    // Predicated region
    $region30: #{tpu_custom_call.1} parent=1 // pred_check
      _
    $region31: #{tpu_custom_call.1} parent=1 // pred_check_branch
      %39 = sbr.rel (0) target = $region33
    $region32: #{tpu_custom_call.1} parent=1 // pred_region
      _
    $region33: #{tpu_custom_call.1} parent=1 // pred_fallthru
      _
    // Predicated region
    $region34: #{tpu_custom_call.1} parent=1 // pred_check
      _
    $region35: #{tpu_custom_call.1} parent=1 // pred_check_branch
      %41 = sbr.rel (0) target = $region37
    $region36: #{tpu_custom_call.1} parent=1 // pred_region
      _
    $region37: #{tpu_custom_call.1} parent=1 // pred_fallthru
      _
    // Predicated region
    $region38: #{tpu_custom_call.1} parent=1 // pred_check
      _
    $region39: #{tpu_custom_call.1} parent=1 // pred_check_branch
      %43 = sbr.rel (0) target = $region41
    $region40: #{tpu_custom_call.1} parent=1 // pred_region
      _
    $region41: #{tpu_custom_call.1} parent=1 // pred_fallthru
      _
    // Predicated region
    $region42: #{tpu_custom_call.1} parent=1 // pred_check
      _
    $region43: #{tpu_custom_call.1} parent=1 // pred_check_branch
      %45 = sbr.rel (0) target = $region45
    $region44: #{tpu_custom_call.1} parent=1 // pred_region
      _
    $region45: #{tpu_custom_call.1} parent=1 // pred_fallthru
      _
    // Predicated region
    $region46: #{tpu_custom_call.1} parent=1 // pred_check
      _
    $region47: #{tpu_custom_call.1} parent=1 // pred_check_branch
      %47 = sbr.rel (0) target = $region49
    $region48: #{tpu_custom_call.1} parent=1 // pred_region
      _
    $region49: #{tpu_custom_call.1} parent=1 // pred_fallthru
      _
    // Predicated region
    $region50: #{tpu_custom_call.1} parent=1 // pred_check
      _
    $region51: #{tpu_custom_call.1} parent=1 // pred_check_branch
      %49 = sbr.rel (0) target = $region53
    $region52: #{tpu_custom_call.1} parent=1 // pred_region
      _
    $region53: #{tpu_custom_call.1} parent=1 // pred_fallthru
      _
    // Predicated region
    $region54: #{tpu_custom_call.1} parent=1 // pred_check
      _
    $region55: #{tpu_custom_call.1} parent=1 // pred_check_branch
      %51 = sbr.rel (0) target = $region57
    $region56: #{tpu_custom_call.1} parent=1 // pred_region
      _
    $region57: #{tpu_custom_call.1} parent=1 // pred_fallthru
      _
    // Predicated region
    $region58: #{tpu_custom_call.1} parent=1 // pred_check
      _
    $region59: #{tpu_custom_call.1} parent=1 // pred_check_branch
      %53 = sbr.rel (0) target = $region61
    $region60: #{tpu_custom_call.1} parent=1 // pred_region
      _
    $region61: #{tpu_custom_call.1} parent=1 // pred_fallthru
      _
    %v54 = vld [vmem:[%s0] sm:$0xff]
    %v55 = vld [vmem:[%s0 + $0x8] sm:$0xff]
    %v56 = vld [vmem:[%s0 + $0x10] sm:$0xff]
    %v57 = vld [vmem:[%s0 + $0x18] sm:$0xff]
    %v58 = vld [vmem:[%s7] sm:$0xff]
    %v59 = vld [vmem:[%s7 + $0x8] sm:$0xff]
    %v60 = vld [vmem:[%s7 + $0x10] sm:$0xff]
    %v61 = vld [vmem:[%s7 + $0x18] sm:$0xff]
    %v62 = vld [vmem:[%s8] sm:$0x1]
    %v64 = vlaneseq
    %v65 = vshrl.u32 %v64, 7
    %v66 = vsub.s32 0, %v65
    %v67 = vrot.slane %v62, %v66
    %vm69 = vcmask 261120
    %v71 = vsel %vm69, %v54, 0
    %v74 = vsel %vm69, %v55, 0
    %v77 = vsel %vm69, %v56, 0
    %v80 = vsel %vm69, %v57, 0
    %82 = vmatprep.subr.mxu0 0.0
    %83 = vmatpush1.msra.mxu0 %v58
    %84 = vmatprep.subr.mxu0 0.0
    %85 = vmatpush1.msra.mxu0 %v59
    %86 = vmatprep.subr.mxu0 0.0
    %87 = vmatpush1.msra.mxu0 %v60
    %88 = vmatprep.subr.mxu0 0.0
    %89 = vmatpush1.msra.mxu0 %v61
    %90 = vmatprep.subr.mxu0 0.0
    %91 = vmatpush1.msra.mxu0 0.0
    %92 = vmatprep.subr.mxu0 0.0
    %93 = vmatpush1.msra.mxu0 0.0
    %94 = vmatprep.subr.mxu0 0.0
    %95 = vmatpush1.msra.mxu0 0.0
    %96 = vmatprep.subr.mxu0 0.0
    %97 = vmatpush1.msra.mxu0 0.0
    %98 = vmatprep.subr.mxu0 0.0
    %99 = vmatpush1.msra.mxu0 0.0
    %100 = vmatprep.subr.mxu0 0.0
    %101 = vmatpush1.msra.mxu0 0.0
    %102 = vmatprep.subr.mxu0 0.0
    %103 = vmatpush1.msra.mxu0 0.0
    %104 = vmatprep.subr.mxu0 0.0
    %105 = vmatpush1.msra.mxu0 0.0
    %106 = vmatprep.subr.mxu0 0.0
    %107 = vmatpush1.msra.mxu0 0.0
    %108 = vmatprep.subr.mxu0 0.0
    %109 = vmatpush1.msra.mxu0 0.0
    %110 = vmatprep.subr.mxu0 0.0
    %111 = vmatpush1.msra.mxu0 0.0
    %112 = vmatprep.subr.mxu0 0.0
    %113 = vmatpush1.msra.mxu0 0.0
    %114 = vmatprep.subr.mxu0 0.0
    %115 = vmatpush1.msra.mxu0 0.0
    %116 = vmatprep.subr.mxu0 0.0
    %117 = vmatpush1.msra.mxu0 0.0
    %118 = vmatprep.subr.mxu0 0.0
    %119 = vmatpush1.msra.mxu0 0.0
    %120 = vmatprep.subr.mxu0 0.0
    %121 = vmatpush1.msra.mxu0 0.0
    %122 = vmatprep.subr.mxu0 0.0
    %123 = vmatpush1.msra.mxu0 0.0
    %124 = vmatprep.subr.mxu0 0.0
    %125 = vmatpush1.msra.mxu0 0.0
    %126 = vmatprep.subr.mxu0 0.0
    %127 = vmatpush1.msra.mxu0 0.0
    %128 = vmatprep.subr.mxu0 0.0
    %129 = vmatpush1.msra.mxu0 0.0
    %130 = vmatprep.subr.mxu0 0.0
    %131 = vmatpush1.msra.mxu0 0.0
    %132 = vmatprep.subr.mxu0 0.0
    %133 = vmatpush1.msra.mxu0 0.0
    %134 = vmatprep.subr.mxu0 0.0
    %135 = vmatpush1.msra.mxu0 0.0
    %136 = vmatprep.subr.mxu0 0.0
    %137 = vmatpush1.msra.mxu0 0.0
    %138 = vmatprep.subr.mxu0 0.0
    %139 = vmatpush1.msra.mxu0 0.0
    %140 = vmatprep.subr.mxu0 0.0
    %141 = vmatpush1.msra.mxu0 0.0
    %142 = vmatprep.subr.mxu0 0.0
    %143 = vmatpush1.msra.mxu0 0.0
    %144 = vmatprep.subr.mxu0 0.0
    %145 = vmatpush1.msra.mxu0 0.0
    %146 = vmatprep.mubr.f32.mxu0 0.0
    %147 = vmatmul.mubr.f32.gmra.mrb[0].mxu0 %v71
    %v148 = vpop.f32.mrb[0].mxu0
    %v149 = vadd.f32 %v67, %v148
    %v150 = vpop.f32.mrb[0].mxu0
    %151 = vmatprep.mubr.f32.mxu0 0.0
    %152 = vmatmul.mubr.f32.gmra.mrb[0].mxu0 %v74
    %v153 = vpop.f32.mrb[0].mxu0
    %v154 = vadd.f32 %v67, %v153
    %v155 = vpop.f32.mrb[0].mxu0
    %156 = vmatprep.mubr.f32.mxu0 0.0
    %157 = vmatmul.mubr.f32.gmra.mrb[0].mxu0 %v77
    %v158 = vpop.f32.mrb[0].mxu0
    %v159 = vadd.f32 %v67, %v158
    %v160 = vpop.f32.mrb[0].mxu0
    %161 = vmatprep.mubr.f32.mxu0 0.0
    %162 = vmatmul.mubr.f32.gmra.mrb[0].mxu0 %v80
    %v163 = vpop.f32.mrb[0].mxu0
    %v164 = vadd.f32 %v67, %v163
    %v165 = vpop.f32.mrb[0].mxu0
    %166 = vdwg.mxu0
    %v167 = vld [vmem:[%s5] sm:$0xff]
    %v168 = vld [vmem:[%s5 + $0x8] sm:$0xff]
    %v169 = vld [vmem:[%s5 + $0x10] sm:$0xff]
    %v170 = vld [vmem:[%s5 + $0x18] sm:$0xff]
    %v171 = vld [vmem:[%s5 + $0x20] sm:$0xff]
    %v172 = vld [vmem:[%s5 + $0x28] sm:$0xff]
    %v173 = vld [vmem:[%s5 + $0x30] sm:$0xff]
    %v174 = vld [vmem:[%s5 + $0x38] sm:$0xff]
    %v175 = vld [vmem:[%s9] sm:$0xff]
    %v176 = vld [vmem:[%s9 + $0x8] sm:$0xff]
    %v177 = vld [vmem:[%s9 + $0x10] sm:$0xff]
    %v178 = vld [vmem:[%s9 + $0x18] sm:$0xff]
    %v179 = vld [vmem:[%s1] sm:$0xff]
    %v180 = vld [vmem:[%s1 + $0x8] sm:$0xff]
    %v181 = vld [vmem:[%s1 + $0x10] sm:$0xff]
    %v182 = vld [vmem:[%s1 + $0x18] sm:$0xff]
    %v183 = vld [vmem:[%s1 + $0x20] sm:$0xff]
    %v184 = vld [vmem:[%s1 + $0x28] sm:$0xff]
    %v185 = vld [vmem:[%s1 + $0x30] sm:$0xff]
    %v186 = vld [vmem:[%s1 + $0x38] sm:$0xff]
    %v187 = vld [vmem:[%s10] sm:$0xff]
    %v188 = vld [vmem:[%s10 + $0x8] sm:$0xff]
    %v189 = vld [vmem:[%s10 + $0x10] sm:$0xff]
    %v190 = vld [vmem:[%s10 + $0x18] sm:$0xff]
    %192 = vset.pattern.permute.xlu0 0
    %193 = vperm.xlu0 %192, %v187
    %v194 = vpop.permute.xlu0 %193
    %197 = vset.pattern.permute.xlu0 0
    %198 = vperm.xlu0 %197, %v188
    %v199 = vpop.permute.xlu0 %198
    %202 = vset.pattern.permute.xlu0 0
    %203 = vperm.xlu0 %202, %v189
    %v204 = vpop.permute.xlu0 %203
    %207 = vset.pattern.permute.xlu0 0
    %208 = vperm.xlu0 %207, %v190
    %v209 = vpop.permute.xlu0 %208
    %v212 = vsel %vm69, %v175, 0
    %v215 = vsel %vm69, %v176, 0
    %v218 = vsel %vm69, %v177, 0
    %v221 = vsel %vm69, %v178, 0
    %223 = vmatprep.subr.mxu0 %v180
    %224 = vmatpush1.msra.mxu0 %v179
    %225 = vmatprep.subr.mxu0 %v182
    %226 = vmatpush1.msra.mxu0 %v181
    %227 = vmatprep.subr.mxu0 %v184
    %228 = vmatpush1.msra.mxu0 %v183
    %229 = vmatprep.subr.mxu0 %v186
    %230 = vmatpush1.msra.mxu0 %v185
    %231 = vmatprep.subr.mxu0 0.0
    %232 = vmatpush1.msra.mxu0 0.0
    %233 = vmatprep.subr.mxu0 0.0
    %234 = vmatpush1.msra.mxu0 0.0
    %235 = vmatprep.subr.mxu0 0.0
    %236 = vmatpush1.msra.mxu0 0.0
    %237 = vmatprep.subr.mxu0 0.0
    %238 = vmatpush1.msra.mxu0 0.0
    %239 = vmatprep.subr.mxu0 0.0
    %240 = vmatpush1.msra.mxu0 0.0
    %241 = vmatprep.subr.mxu0 0.0
    %242 = vmatpush1.msra.mxu0 0.0
    %243 = vmatprep.subr.mxu0 0.0
    %244 = vmatpush1.msra.mxu0 0.0
    %245 = vmatprep.subr.mxu0 0.0
    %246 = vmatpush1.msra.mxu0 0.0
    %247 = vmatprep.subr.mxu0 0.0
    %248 = vmatpush1.msra.mxu0 0.0
    %249 = vmatprep.subr.mxu0 0.0
    %250 = vmatpush1.msra.mxu0 0.0
    %251 = vmatprep.subr.mxu0 0.0
    %252 = vmatpush1.msra.mxu0 0.0
    %253 = vmatprep.subr.mxu0 0.0
    %254 = vmatpush1.msra.mxu0 0.0
    %255 = vmatprep.subr.mxu0 0.0
    %256 = vmatpush1.msra.mxu0 0.0
    %257 = vmatprep.subr.mxu0 0.0
    %258 = vmatpush1.msra.mxu0 0.0
    %259 = vmatprep.subr.mxu0 0.0
    %260 = vmatpush1.msra.mxu0 0.0
    %261 = vmatprep.subr.mxu0 0.0
    %262 = vmatpush1.msra.mxu0 0.0
    %263 = vmatprep.subr.mxu0 0.0
    %264 = vmatpush1.msra.mxu0 0.0
    %265 = vmatprep.subr.mxu0 0.0
    %266 = vmatpush1.msra.mxu0 0.0
    %267 = vmatprep.subr.mxu0 0.0
    %268 = vmatpush1.msra.mxu0 0.0
    %269 = vmatprep.subr.mxu0 0.0
    %270 = vmatpush1.msra.mxu0 0.0
    %271 = vmatprep.subr.mxu0 0.0
    %272 = vmatpush1.msra.mxu0 0.0
    %273 = vmatprep.subr.mxu0 0.0
    %274 = vmatpush1.msra.mxu0 0.0
    %275 = vmatprep.subr.mxu0 0.0
    %276 = vmatpush1.msra.mxu0 0.0
    %277 = vmatprep.subr.mxu0 0.0
    %278 = vmatpush1.msra.mxu0 0.0
    %279 = vmatprep.subr.mxu0 0.0
    %280 = vmatpush1.msra.mxu0 0.0
    %281 = vmatprep.subr.mxu0 0.0
    %282 = vmatpush1.msra.mxu0 0.0
    %283 = vmatprep.subr.mxu0 0.0
    %284 = vmatpush1.msra.mxu0 0.0
    %285 = vmatprep.subr.mxu0 0.0
    %286 = vmatpush1.msra.mxu0 0.0
    %287 = vmatprep.mubr.f32.mxu0 0.0
    %288 = vmatmul.mubr.f32.gmra.mrb[0].mxu0 %v212
    %v289 = vpop.f32.mrb[0].mxu0
    %v290 = vadd.f32 %v194, %v289
    %v291 = vpop.f32.mrb[0].mxu0
    %v292 = vadd.f32 %v194, %v291
    %293 = vmatprep.mubr.f32.mxu0 0.0
    %294 = vmatmul.mubr.f32.gmra.mrb[0].mxu0 %v215
    %v295 = vpop.f32.mrb[0].mxu0
    %v296 = vadd.f32 %v199, %v295
    %v297 = vpop.f32.mrb[0].mxu0
    %v298 = vadd.f32 %v199, %v297
    %299 = vmatprep.mubr.f32.mxu0 0.0
    %300 = vmatmul.mubr.f32.gmra.mrb[0].mxu0 %v218
    %v301 = vpop.f32.mrb[0].mxu0
    %v302 = vadd.f32 %v204, %v301
    %v303 = vpop.f32.mrb[0].mxu0
    %v304 = vadd.f32 %v204, %v303
    %305 = vmatprep.mubr.f32.mxu0 0.0
    %306 = vmatmul.mubr.f32.gmra.mrb[0].mxu0 %v221
    %v307 = vpop.f32.mrb[0].mxu0
    %v308 = vadd.f32 %v209, %v307
    %v309 = vpop.f32.mrb[0].mxu0
    %v310 = vadd.f32 %v209, %v309
    %311 = vdwg.mxu0
    %v312 = vmul.f32 %v167, %v290
    %v313 = vmul.f32 %v168, %v292
    %v314 = vmul.f32 %v169, %v296
    %v315 = vmul.f32 %v170, %v298
    %v316 = vmul.f32 %v171, %v302
    %v317 = vmul.f32 %v172, %v304
    %v318 = vmul.f32 %v173, %v308
    %v319 = vmul.f32 %v174, %v310
    %v320 = vld [vmem:[%s6] sm:$0xff]
    %v321 = vld [vmem:[%s6 + $0x8] sm:$0xff]
    %v322 = vld [vmem:[%s6 + $0x10] sm:$0xff]
    %v323 = vld [vmem:[%s6 + $0x18] sm:$0xff]
    %v324 = vld [vmem:[%s6 + $0x20] sm:$0xff]
    %v325 = vld [vmem:[%s6 + $0x28] sm:$0xff]
    %v326 = vld [vmem:[%s6 + $0x30] sm:$0xff]
    %v327 = vld [vmem:[%s6 + $0x38] sm:$0xff]
    %v328 = vld [vmem:[%s6 + $0x40] sm:$0xff]
    %v329 = vld [vmem:[%s6 + $0x48] sm:$0xff]
    %v330 = vld [vmem:[%s6 + $0x50] sm:$0xff]
    %v331 = vld [vmem:[%s6 + $0x58] sm:$0xff]
    %v332 = vld [vmem:[%s6 + $0x60] sm:$0xff]
    %v333 = vld [vmem:[%s6 + $0x68] sm:$0xff]
    %v334 = vld [vmem:[%s6 + $0x70] sm:$0xff]
    %v335 = vld [vmem:[%s6 + $0x78] sm:$0xff]
    %v336 = vld [vmem:[%s6 + $0x80] sm:$0xff]
    %v337 = vld [vmem:[%s6 + $0x88] sm:$0xff]
    %v338 = vld [vmem:[%s6 + $0x90] sm:$0xff]
    %v339 = vld [vmem:[%s6 + $0x98] sm:$0xff]
    %v340 = vld [vmem:[%s6 + $0xa0] sm:$0xff]
    %v341 = vld [vmem:[%s6 + $0xa8] sm:$0xff]
    %v342 = vld [vmem:[%s6 + $0xb0] sm:$0xff]
    %v343 = vld [vmem:[%s6 + $0xb8] sm:$0xff]
    %v344 = vld [vmem:[%s6 + $0xc0] sm:$0xff]
    %v345 = vld [vmem:[%s6 + $0xc8] sm:$0xff]
    %v346 = vld [vmem:[%s6 + $0xd0] sm:$0xff]
    %v347 = vld [vmem:[%s6 + $0xd8] sm:$0xff]
    %v348 = vld [vmem:[%s6 + $0xe0] sm:$0xff]
    %v349 = vld [vmem:[%s6 + $0xe8] sm:$0xff]
    %v350 = vld [vmem:[%s6 + $0xf0] sm:$0xff]
    %v351 = vld [vmem:[%s6 + $0xf8] sm:$0xff]
    %v352 = vld [vmem:[%s2] sm:$0xff]
    %v353 = vld [vmem:[%s2 + $0x8] sm:$0xff]
    %v354 = vld [vmem:[%s2 + $0x10] sm:$0xff]
    %v355 = vld [vmem:[%s2 + $0x18] sm:$0xff]
    %v356 = vld [vmem:[%s2 + $0x20] sm:$0xff]
    %v357 = vld [vmem:[%s2 + $0x28] sm:$0xff]
    %v358 = vld [vmem:[%s2 + $0x30] sm:$0xff]
    %v359 = vld [vmem:[%s2 + $0x38] sm:$0xff]
    %v360 = vld [vmem:[%s2 + $0x40] sm:$0xff]
    %v361 = vld [vmem:[%s2 + $0x48] sm:$0xff]
    %v362 = vld [vmem:[%s2 + $0x50] sm:$0xff]
    %v363 = vld [vmem:[%s2 + $0x58] sm:$0xff]
    %v364 = vld [vmem:[%s2 + $0x60] sm:$0xff]
    %v365 = vld [vmem:[%s2 + $0x68] sm:$0xff]
    %v366 = vld [vmem:[%s2 + $0x70] sm:$0xff]
    %v367 = vld [vmem:[%s2 + $0x78] sm:$0xff]
    %v368 = vld [vmem:[%s2 + $0x80] sm:$0xff]
    %v369 = vld [vmem:[%s2 + $0x88] sm:$0xff]
    %v370 = vld [vmem:[%s2 + $0x90] sm:$0xff]
    %v371 = vld [vmem:[%s2 + $0x98] sm:$0xff]
    %v372 = vld [vmem:[%s2 + $0xa0] sm:$0xff]
    %v373 = vld [vmem:[%s2 + $0xa8] sm:$0xff]
    %v374 = vld [vmem:[%s2 + $0xb0] sm:$0xff]
    %v375 = vld [vmem:[%s2 + $0xb8] sm:$0xff]
    %v376 = vld [vmem:[%s2 + $0xc0] sm:$0xff]
    %v377 = vld [vmem:[%s2 + $0xc8] sm:$0xff]
    %v378 = vld [vmem:[%s2 + $0xd0] sm:$0xff]
    %v379 = vld [vmem:[%s2 + $0xd8] sm:$0xff]
    %v380 = vld [vmem:[%s2 + $0xe0] sm:$0xff]
    %v381 = vld [vmem:[%s2 + $0xe8] sm:$0xff]
    %v382 = vld [vmem:[%s2 + $0xf0] sm:$0xff]
    %v383 = vld [vmem:[%s2 + $0xf8] sm:$0xff]
    %v384 = vld [vmem:[%s11] sm:$0xff]
    %v385 = vld [vmem:[%s11 + $0x8] sm:$0xff]
    %v386 = vld [vmem:[%s11 + $0x10] sm:$0xff]
    %v387 = vld [vmem:[%s11 + $0x18] sm:$0xff]
    %v388 = vld [vmem:[%s12] sm:$0x1]
    %v390 = vlaneseq
    %v391 = vshrl.u32 %v390, 7
    %v392 = vsub.s32 0, %v391
    %v393 = vrot.slane %v388, %v392
    %v396 = vsel %vm69, %v352, 0
    %v399 = vsel %vm69, %v353, 0
    %v402 = vsel %vm69, %v354, 0
    %v405 = vsel %vm69, %v355, 0
    %v408 = vsel %vm69, %v356, 0
    %v411 = vsel %vm69, %v357, 0
    %v414 = vsel %vm69, %v358, 0
    %v417 = vsel %vm69, %v359, 0
    %v420 = vsel %vm69, %v360, 0
    %v423 = vsel %vm69, %v361, 0
    %v426 = vsel %vm69, %v362, 0
    %v429 = vsel %vm69, %v363, 0
    %v432 = vsel %vm69, %v364, 0
    %v435 = vsel %vm69, %v365, 0
    %v438 = vsel %vm69, %v366, 0
    %v441 = vsel %vm69, %v367, 0
    %v444 = vsel %vm69, %v368, 0
    %v447 = vsel %vm69, %v369, 0
    %v450 = vsel %vm69, %v370, 0
    %v453 = vsel %vm69, %v371, 0
    %v456 = vsel %vm69, %v372, 0
    %v459 = vsel %vm69, %v373, 0
    %v462 = vsel %vm69, %v374, 0
    %v465 = vsel %vm69, %v375, 0
    %v468 = vsel %vm69, %v376, 0
    %v471 = vsel %vm69, %v377, 0
    %v474 = vsel %vm69, %v378, 0
    %v477 = vsel %vm69, %v379, 0
    %v480 = vsel %vm69, %v380, 0
    %v483 = vsel %vm69, %v381, 0
    %v486 = vsel %vm69, %v382, 0
    %v489 = vsel %vm69, %v383, 0
    %491 = vmatprep.subr.mxu0 0.0
    %492 = vmatpush1.msra.mxu0 %v384
    %493 = vmatprep.subr.mxu0 0.0
    %494 = vmatpush1.msra.mxu0 %v385
    %495 = vmatprep.subr.mxu0 0.0
    %496 = vmatpush1.msra.mxu0 %v386
    %497 = vmatprep.subr.mxu0 0.0
    %498 = vmatpush1.msra.mxu0 %v387
    %499 = vmatprep.subr.mxu0 0.0
    %500 = vmatpush1.msra.mxu0 0.0
    %501 = vmatprep.subr.mxu0 0.0
    %502 = vmatpush1.msra.mxu0 0.0
    %503 = vmatprep.subr.mxu0 0.0
    %504 = vmatpush1.msra.mxu0 0.0
    %505 = vmatprep.subr.mxu0 0.0
    %506 = vmatpush1.msra.mxu0 0.0
    %507 = vmatprep.subr.mxu0 0.0
    %508 = vmatpush1.msra.mxu0 0.0
    %509 = vmatprep.subr.mxu0 0.0
    %510 = vmatpush1.msra.mxu0 0.0
    %511 = vmatprep.subr.mxu0 0.0
    %512 = vmatpush1.msra.mxu0 0.0
    %513 = vmatprep.subr.mxu0 0.0
    %514 = vmatpush1.msra.mxu0 0.0
    %515 = vmatprep.subr.mxu0 0.0
    %516 = vmatpush1.msra.mxu0 0.0
    %517 = vmatprep.subr.mxu0 0.0
    %518 = vmatpush1.msra.mxu0 0.0
    %519 = vmatprep.subr.mxu0 0.0
    %520 = vmatpush1.msra.mxu0 0.0
    %521 = vmatprep.subr.mxu0 0.0
    %522 = vmatpush1.msra.mxu0 0.0
    %523 = vmatprep.subr.mxu0 0.0
    %524 = vmatpush1.msra.mxu0 0.0
    %525 = vmatprep.subr.mxu0 0.0
    %526 = vmatpush1.msra.mxu0 0.0
    %527 = vmatprep.subr.mxu0 0.0
    %528 = vmatpush1.msra.mxu0 0.0
    %529 = vmatprep.subr.mxu0 0.0
    %530 = vmatpush1.msra.mxu0 0.0
    %531 = vmatprep.subr.mxu0 0.0
    %532 = vmatpush1.msra.mxu0 0.0
    %533 = vmatprep.subr.mxu0 0.0
    %534 = vmatpush1.msra.mxu0 0.0
    %535 = vmatprep.subr.mxu0 0.0
    %536 = vmatpush1.msra.mxu0 0.0
    %537 = vmatprep.subr.mxu0 0.0
    %538 = vmatpush1.msra.mxu0 0.0
    %539 = vmatprep.subr.mxu0 0.0
    %540 = vmatpush1.msra.mxu0 0.0
    %541 = vmatprep.subr.mxu0 0.0
    %542 = vmatpush1.msra.mxu0 0.0
    %543 = vmatprep.subr.mxu0 0.0
    %544 = vmatpush1.msra.mxu0 0.0
    %545 = vmatprep.subr.mxu0 0.0
    %546 = vmatpush1.msra.mxu0 0.0
    %547 = vmatprep.subr.mxu0 0.0
    %548 = vmatpush1.msra.mxu0 0.0
    %549 = vmatprep.subr.mxu0 0.0
    %550 = vmatpush1.msra.mxu0 0.0
    %551 = vmatprep.subr.mxu0 0.0
    %552 = vmatpush1.msra.mxu0 0.0
    %553 = vmatprep.subr.mxu0 0.0
    %554 = vmatpush1.msra.mxu0 0.0
    %555 = vmatprep.mubr.f32.mxu0 0.0
    %556 = vmatmul.mubr.f32.gmra.mrb[0].mxu0 %v396
    %v557 = vpop.f32.mrb[0].mxu0
    %v558 = vadd.f32 %v393, %v557
    %v559 = vpop.f32.mrb[0].mxu0
    %560 = vmatprep.mubr.f32.mxu0 0.0
    %561 = vmatmul.mubr.f32.gmra.mrb[0].mxu0 %v399
    %v562 = vpop.f32.mrb[0].mxu0
    %v563 = vadd.f32 %v393, %v562
    %v564 = vpop.f32.mrb[0].mxu0
    %565 = vmatprep.mubr.f32.mxu0 0.0
    %566 = vmatmul.mubr.f32.gmra.mrb[0].mxu0 %v402
    %v567 = vpop.f32.mrb[0].mxu0
    %v568 = vadd.f32 %v393, %v567
    %v569 = vpop.f32.mrb[0].mxu0
    %570 = vmatprep.mubr.f32.mxu0 0.0
    %571 = vmatmul.mubr.f32.gmra.mrb[0].mxu0 %v405
    %v572 = vpop.f32.mrb[0].mxu0
    %v573 = vadd.f32 %v393, %v572
    %v574 = vpop.f32.mrb[0].mxu0
    %575 = vmatprep.mubr.f32.mxu0 0.0
    %576 = vmatmul.mubr.f32.gmra.mrb[0].mxu0 %v408
    %v577 = vpop.f32.mrb[0].mxu0
    %v578 = vadd.f32 %v393, %v577
    %v579 = vpop.f32.mrb[0].mxu0
    %580 = vmatprep.mubr.f32.mxu0 0.0
    %581 = vmatmul.mubr.f32.gmra.mrb[0].mxu0 %v411
    %v582 = vpop.f32.mrb[0].mxu0
    %v583 = vadd.f32 %v393, %v582
    %v584 = vpop.f32.mrb[0].mxu0
    %585 = vmatprep.mubr.f32.mxu0 0.0
    %586 = vmatmul.mubr.f32.gmra.mrb[0].mxu0 %v414
    %v587 = vpop.f32.mrb[0].mxu0
    %v588 = vadd.f32 %v393, %v587
    %v589 = vpop.f32.mrb[0].mxu0
    %590 = vmatprep.mubr.f32.mxu0 0.0
    %591 = vmatmul.mubr.f32.gmra.mrb[0].mxu0 %v417
    %v592 = vpop.f32.mrb[0].mxu0
    %v593 = vadd.f32 %v393, %v592
    %v594 = vpop.f32.mrb[0].mxu0
    %595 = vmatprep.mubr.f32.mxu0 0.0
    %596 = vmatmul.mubr.f32.gmra.mrb[0].mxu0 %v420
    %v597 = vpop.f32.mrb[0].mxu0
    %v598 = vadd.f32 %v393, %v597
    %v599 = vpop.f32.mrb[0].mxu0
    %600 = vmatprep.mubr.f32.mxu0 0.0
    %601 = vmatmul.mubr.f32.gmra.mrb[0].mxu0 %v423
    %v602 = vpop.f32.mrb[0].mxu0
    %v603 = vadd.f32 %v393, %v602
    %v604 = vpop.f32.mrb[0].mxu0
    %605 = vmatprep.mubr.f32.mxu0 0.0
    %606 = vmatmul.mubr.f32.gmra.mrb[0].mxu0 %v426
    %v607 = vpop.f32.mrb[0].mxu0
    %v608 = vadd.f32 %v393, %v607
    %v609 = vpop.f32.mrb[0].mxu0
    %610 = vmatprep.mubr.f32.mxu0 0.0
    %611 = vmatmul.mubr.f32.gmra.mrb[0].mxu0 %v429
    %v612 = vpop.f32.mrb[0].mxu0
    %v613 = vadd.f32 %v393, %v612
    %v614 = vpop.f32.mrb[0].mxu0
    %615 = vmatprep.mubr.f32.mxu0 0.0
    %616 = vmatmul.mubr.f32.gmra.mrb[0].mxu0 %v432
    %v617 = vpop.f32.mrb[0].mxu0
    %v618 = vadd.f32 %v393, %v617
    %v619 = vpop.f32.mrb[0].mxu0
    %620 = vmatprep.mubr.f32.mxu0 0.0
    %621 = vmatmul.mubr.f32.gmra.mrb[0].mxu0 %v435
    %v622 = vpop.f32.mrb[0].mxu0
    %v623 = vadd.f32 %v393, %v622
    %v624 = vpop.f32.mrb[0].mxu0
    %625 = vmatprep.mubr.f32.mxu0 0.0
    %626 = vmatmul.mubr.f32.gmra.mrb[0].mxu0 %v438
    %v627 = vpop.f32.mrb[0].mxu0
    %v628 = vadd.f32 %v393, %v627
    %v629 = vpop.f32.mrb[0].mxu0
    %630 = vmatprep.mubr.f32.mxu0 0.0
    %631 = vmatmul.mubr.f32.gmra.mrb[0].mxu0 %v441
    %v632 = vpop.f32.mrb[0].mxu0
    %v633 = vadd.f32 %v393, %v632
    %v634 = vpop.f32.mrb[0].mxu0
    %635 = vmatprep.mubr.f32.mxu0 0.0
    %636 = vmatmul.mubr.f32.gmra.mrb[0].mxu0 %v444
    %v637 = vpop.f32.mrb[0].mxu0
    %v638 = vadd.f32 %v393, %v637
    %v639 = vpop.f32.mrb[0].mxu0
    %640 = vmatprep.mubr.f32.mxu0 0.0
    %641 = vmatmul.mubr.f32.gmra.mrb[0].mxu0 %v447
    %v642 = vpop.f32.mrb[0].mxu0
    %v643 = vadd.f32 %v393, %v642
    %v644 = vpop.f32.mrb[0].mxu0
    %645 = vmatprep.mubr.f32.mxu0 0.0
    %646 = vmatmul.mubr.f32.gmra.mrb[0].mxu0 %v450
    %v647 = vpop.f32.mrb[0].mxu0
    %v648 = vadd.f32 %v393, %v647
    %v649 = vpop.f32.mrb[0].mxu0
    %650 = vmatprep.mubr.f32.mxu0 0.0
    %651 = vmatmul.mubr.f32.gmra.mrb[0].mxu0 %v453
    %v652 = vpop.f32.mrb[0].mxu0
    %v653 = vadd.f32 %v393, %v652
    %v654 = vpop.f32.mrb[0].mxu0
    %655 = vmatprep.mubr.f32.mxu0 0.0
    %656 = vmatmul.mubr.f32.gmra.mrb[0].mxu0 %v456
    %v657 = vpop.f32.mrb[0].mxu0
    %v658 = vadd.f32 %v393, %v657
    %v659 = vpop.f32.mrb[0].mxu0
    %660 = vmatprep.mubr.f32.mxu0 0.0
    %661 = vmatmul.mubr.f32.gmra.mrb[0].mxu0 %v459
    %v662 = vpop.f32.mrb[0].mxu0
    %v663 = vadd.f32 %v393, %v662
    %v664 = vpop.f32.mrb[0].mxu0
    %665 = vmatprep.mubr.f32.mxu0 0.0
    %666 = vmatmul.mubr.f32.gmra.mrb[0].mxu0 %v462
    %v667 = vpop.f32.mrb[0].mxu0
    %v668 = vadd.f32 %v393, %v667
    %v669 = vpop.f32.mrb[0].mxu0
    %670 = vmatprep.mubr.f32.mxu0 0.0
    %671 = vmatmul.mubr.f32.gmra.mrb[0].mxu0 %v465
    %v672 = vpop.f32.mrb[0].mxu0
    %v673 = vadd.f32 %v393, %v672
    %v674 = vpop.f32.mrb[0].mxu0
    %675 = vmatprep.mubr.f32.mxu0 0.0
    %676 = vmatmul.mubr.f32.gmra.mrb[0].mxu0 %v468
    %v677 = vpop.f32.mrb[0].mxu0
    %v678 = vadd.f32 %v393, %v677
    %v679 = vpop.f32.mrb[0].mxu0
    %680 = vmatprep.mubr.f32.mxu0 0.0
    %681 = vmatmul.mubr.f32.gmra.mrb[0].mxu0 %v471
    %v682 = vpop.f32.mrb[0].mxu0
    %v683 = vadd.f32 %v393, %v682
    %v684 = vpop.f32.mrb[0].mxu0
    %685 = vmatprep.mubr.f32.mxu0 0.0
    %686 = vmatmul.mubr.f32.gmra.mrb[0].mxu0 %v474
    %v687 = vpop.f32.mrb[0].mxu0
    %v688 = vadd.f32 %v393, %v687
    %v689 = vpop.f32.mrb[0].mxu0
    %690 = vmatprep.mubr.f32.mxu0 0.0
    %691 = vmatmul.mubr.f32.gmra.mrb[0].mxu0 %v477
    %v692 = vpop.f32.mrb[0].mxu0
    %v693 = vadd.f32 %v393, %v692
    %v694 = vpop.f32.mrb[0].mxu0
    %695 = vmatprep.mubr.f32.mxu0 0.0
    %696 = vmatmul.mubr.f32.gmra.mrb[0].mxu0 %v480
    %v697 = vpop.f32.mrb[0].mxu0
    %v698 = vadd.f32 %v393, %v697
    %v699 = vpop.f32.mrb[0].mxu0
    %700 = vmatprep.mubr.f32.mxu0 0.0
    %701 = vmatmul.mubr.f32.gmra.mrb[0].mxu0 %v483
    %v702 = vpop.f32.mrb[0].mxu0
    %v703 = vadd.f32 %v393, %v702
    %v704 = vpop.f32.mrb[0].mxu0
    %705 = vmatprep.mubr.f32.mxu0 0.0
    %706 = vmatmul.mubr.f32.gmra.mrb[0].mxu0 %v486
    %v707 = vpop.f32.mrb[0].mxu0
    %v708 = vadd.f32 %v393, %v707
    %v709 = vpop.f32.mrb[0].mxu0
    %710 = vmatprep.mubr.f32.mxu0 0.0
    %711 = vmatmul.mubr.f32.gmra.mrb[0].mxu0 %v489
    %v712 = vpop.f32.mrb[0].mxu0
    %v713 = vadd.f32 %v393, %v712
    %v714 = vpop.f32.mrb[0].mxu0
    %715 = vdwg.mxu0
    %v716 = vmul.f32 %v320, %v558
    %v717 = vmul.f32 %v321, %v563
    %v718 = vmul.f32 %v322, %v568
    %v719 = vmul.f32 %v323, %v573
    %v720 = vmul.f32 %v324, %v578
    %v721 = vmul.f32 %v325, %v583
    %v722 = vmul.f32 %v326, %v588
    %v723 = vmul.f32 %v327, %v593
    %v724 = vmul.f32 %v328, %v598
    %v725 = vmul.f32 %v329, %v603
    %v726 = vmul.f32 %v330, %v608
    %v727 = vmul.f32 %v331, %v613
    %v728 = vmul.f32 %v332, %v618
    %v729 = vmul.f32 %v333, %v623
    %v730 = vmul.f32 %v334, %v628
    %v731 = vmul.f32 %v335, %v633
    %v732 = vmul.f32 %v336, %v638
    %v733 = vmul.f32 %v337, %v643
    %v734 = vmul.f32 %v338, %v648
    %v735 = vmul.f32 %v339, %v653
    %v736 = vmul.f32 %v340, %v658
    %v737 = vmul.f32 %v341, %v663
    %v738 = vmul.f32 %v342, %v668
    %v739 = vmul.f32 %v343, %v673
    %v740 = vmul.f32 %v344, %v678
    %v741 = vmul.f32 %v345, %v683
    %v742 = vmul.f32 %v346, %v688
    %v743 = vmul.f32 %v347, %v693
    %v744 = vmul.f32 %v348, %v698
    %v745 = vmul.f32 %v349, %v703
    %v746 = vmul.f32 %v350, %v708
    %v747 = vmul.f32 %v351, %v713
    %v748 = vld [vmem:[%s3] sm:$0xff]
    %v749 = vld [vmem:[%s3 + $0x8] sm:$0xff]
    %v750 = vld [vmem:[%s3 + $0x10] sm:$0xff]
    %v751 = vld [vmem:[%s3 + $0x18] sm:$0xff]
    %v752 = vld [vmem:[%s3 + $0x20] sm:$0xff]
    %v753 = vld [vmem:[%s3 + $0x28] sm:$0xff]
    %v754 = vld [vmem:[%s3 + $0x30] sm:$0xff]
    %v755 = vld [vmem:[%s3 + $0x38] sm:$0xff]
    %v757 = vsel %vm69, %v149, 0
    %v760 = vsel %vm69, %v154, 0
    %v763 = vsel %vm69, %v159, 0
    %v766 = vsel %vm69, %v164, 0
    %768 = vmatprep.subr.mxu0 %v313
    %769 = vmatpush1.msra.mxu0 %v312
    %770 = vmatprep.subr.mxu0 %v315
    %771 = vmatpush1.msra.mxu0 %v314
    %772 = vmatprep.subr.mxu0 %v317
    %773 = vmatpush1.msra.mxu0 %v316
    %774 = vmatprep.subr.mxu0 %v319
    %775 = vmatpush1.msra.mxu0 %v318
    %776 = vmatprep.subr.mxu0 0.0
    %777 = vmatpush1.msra.mxu0 0.0
    %778 = vmatprep.subr.mxu0 0.0
    %779 = vmatpush1.msra.mxu0 0.0
    %780 = vmatprep.subr.mxu0 0.0
    %781 = vmatpush1.msra.mxu0 0.0
    %782 = vmatprep.subr.mxu0 0.0
    %783 = vmatpush1.msra.mxu0 0.0
    %784 = vmatprep.subr.mxu0 0.0
    %785 = vmatpush1.msra.mxu0 0.0
    %786 = vmatprep.subr.mxu0 0.0
    %787 = vmatpush1.msra.mxu0 0.0
    %788 = vmatprep.subr.mxu0 0.0
    %789 = vmatpush1.msra.mxu0 0.0
    %790 = vmatprep.subr.mxu0 0.0
    %791 = vmatpush1.msra.mxu0 0.0
    %792 = vmatprep.subr.mxu0 0.0
    %793 = vmatpush1.msra.mxu0 0.0
    %794 = vmatprep.subr.mxu0 0.0
    %795 = vmatpush1.msra.mxu0 0.0
    %796 = vmatprep.subr.mxu0 0.0
    %797 = vmatpush1.msra.mxu0 0.0
    %798 = vmatprep.subr.mxu0 0.0
    %799 = vmatpush1.msra.mxu0 0.0
    %800 = vmatprep.subr.mxu0 0.0
    %801 = vmatpush1.msra.mxu0 0.0
    %802 = vmatprep.subr.mxu0 0.0
    %803 = vmatpush1.msra.mxu0 0.0
    %804 = vmatprep.subr.mxu0 0.0
    %805 = vmatpush1.msra.mxu0 0.0
    %806 = vmatprep.subr.mxu0 0.0
    %807 = vmatpush1.msra.mxu0 0.0
    %808 = vmatprep.subr.mxu0 0.0
    %809 = vmatpush1.msra.mxu0 0.0
    %810 = vmatprep.subr.mxu0 0.0
    %811 = vmatpush1.msra.mxu0 0.0
    %812 = vmatprep.subr.mxu0 0.0
    %813 = vmatpush1.msra.mxu0 0.0
    %814 = vmatprep.subr.mxu0 0.0
    %815 = vmatpush1.msra.mxu0 0.0
    %816 = vmatprep.subr.mxu0 0.0
    %817 = vmatpush1.msra.mxu0 0.0
    %818 = vmatprep.subr.mxu0 0.0
    %819 = vmatpush1.msra.mxu0 0.0
    %820 = vmatprep.subr.mxu0 0.0
    %821 = vmatpush1.msra.mxu0 0.0
    %822 = vmatprep.subr.mxu0 0.0
    %823 = vmatpush1.msra.mxu0 0.0
    %824 = vmatprep.subr.mxu0 0.0
    %825 = vmatpush1.msra.mxu0 0.0
    %826 = vmatprep.subr.mxu0 0.0
    %827 = vmatpush1.msra.mxu0 0.0
    %828 = vmatprep.subr.mxu0 0.0
    %829 = vmatpush1.msra.mxu0 0.0
    %830 = vmatprep.subr.mxu0 0.0
    %831 = vmatpush1.msra.mxu0 0.0
    %832 = vmatprep.mubr.f32.mxu0 0.0
    %833 = vmatmul.mubr.f32.gmra.mrb[0].mxu0 %v757
    %v834 = vpop.f32.mrb[0].mxu0
    %v835 = vadd.f32 %v748, %v834
    %v836 = vpop.f32.mrb[0].mxu0
    %v837 = vadd.f32 %v749, %v836
    %838 = vmatprep.mubr.f32.mxu0 0.0
    %839 = vmatmul.mubr.f32.gmra.mrb[0].mxu0 %v760
    %v840 = vpop.f32.mrb[0].mxu0
    %v841 = vadd.f32 %v750, %v840
    %v842 = vpop.f32.mrb[0].mxu0
    %v843 = vadd.f32 %v751, %v842
    %844 = vmatprep.mubr.f32.mxu0 0.0
    %845 = vmatmul.mubr.f32.gmra.mrb[0].mxu0 %v763
    %v846 = vpop.f32.mrb[0].mxu0
    %v847 = vadd.f32 %v752, %v846
    %v848 = vpop.f32.mrb[0].mxu0
    %v849 = vadd.f32 %v753, %v848
    %850 = vmatprep.mubr.f32.mxu0 0.0
    %851 = vmatmul.mubr.f32.gmra.mrb[0].mxu0 %v766
    %v852 = vpop.f32.mrb[0].mxu0
    %v853 = vadd.f32 %v754, %v852
    %v854 = vpop.f32.mrb[0].mxu0
    %v855 = vadd.f32 %v755, %v854
    %856 = vdwg.mxu0
    %857 = vrot.lane.b32.xlu0 %v835, 8
    %v858 = vpop.permute.xlu0 %857
    %859 = vrot.lane.b32.xlu0 %v841, 8
    %v860 = vpop.permute.xlu0 %859
    %861 = vrot.lane.b32.xlu0 %v847, 8
    %v862 = vpop.permute.xlu0 %861
    %863 = vrot.lane.b32.xlu0 %v853, 8
    %v864 = vpop.permute.xlu0 %863
    %865 = vrot.lane.b32.xlu0 %v837, 8
    %v866 = vpop.permute.xlu0 %865
    %867 = vrot.lane.b32.xlu0 %v843, 8
    %v868 = vpop.permute.xlu0 %867
    %869 = vrot.lane.b32.xlu0 %v849, 8
    %v870 = vpop.permute.xlu0 %869
    %871 = vrot.lane.b32.xlu0 %v855, 8
    %v872 = vpop.permute.xlu0 %871
    %v873 = vlaneseq
    %v874 = vand.u32 %v873, 127
    %vm875 = vcmp.lt.s32.totalorder %v874, 8
    %v876 = vsel %vm875, %v858, %v866
    %v877 = vsel %vm875, %v860, %v868
    %v878 = vsel %vm875, %v862, %v870
    %v879 = vsel %vm875, %v864, %v872
    %v880 = vsel %vm875, %v866, %v858
    %v881 = vsel %vm875, %v868, %v860
    %v882 = vsel %vm875, %v870, %v862
    %v883 = vsel %vm875, %v872, %v864
    %v884 = vmax.f32 %v835, %v880
    %v885 = vmax.f32 %v837, %v876
    %v886 = vmax.f32 %v841, %v881
    %v887 = vmax.f32 %v843, %v877
    %v888 = vmax.f32 %v847, %v882
    %v889 = vmax.f32 %v849, %v878
    %v890 = vmax.f32 %v853, %v883
    %v891 = vmax.f32 %v855, %v879
    %892 = vrot.lane.b32.xlu0 %v884, 16
    %v893 = vpop.permute.xlu0 %892
    %894 = vrot.lane.b32.xlu0 %v886, 16
    %v895 = vpop.permute.xlu0 %894
    %896 = vrot.lane.b32.xlu0 %v888, 16
    %v897 = vpop.permute.xlu0 %896
    %898 = vrot.lane.b32.xlu0 %v890, 16
    %v899 = vpop.permute.xlu0 %898
    %900 = vrot.lane.b32.xlu0 %v885, 16
    %v901 = vpop.permute.xlu0 %900
    %902 = vrot.lane.b32.xlu0 %v887, 16
    %v903 = vpop.permute.xlu0 %902
    %904 = vrot.lane.b32.xlu0 %v889, 16
    %v905 = vpop.permute.xlu0 %904
    %906 = vrot.lane.b32.xlu0 %v891, 16
    %v907 = vpop.permute.xlu0 %906
    %vm908 = vcmp.lt.s32.totalorder %v874, 16
    %v909 = vsel %vm908, %v893, %v901
    %v910 = vsel %vm908, %v895, %v903
    %v911 = vsel %vm908, %v897, %v905
    %v912 = vsel %vm908, %v899, %v907
    %v913 = vsel %vm908, %v901, %v893
    %v914 = vsel %vm908, %v903, %v895
    %v915 = vsel %vm908, %v905, %v897
    %v916 = vsel %vm908, %v907, %v899
    %v917 = vmax.f32 %v884, %v913
    %v918 = vmax.f32 %v885, %v909
    %v919 = vmax.f32 %v886, %v914
    %v920 = vmax.f32 %v887, %v910
    %v921 = vmax.f32 %v888, %v915
    %v922 = vmax.f32 %v889, %v911
    %v923 = vmax.f32 %v890, %v916
    %v924 = vmax.f32 %v891, %v912
    %925 = vrot.lane.b32.xlu0 %v917, 32
    %v926 = vpop.permute.xlu0 %925
    %927 = vrot.lane.b32.xlu0 %v919, 32
    %v928 = vpop.permute.xlu0 %927
    %929 = vrot.lane.b32.xlu0 %v921, 32
    %v930 = vpop.permute.xlu0 %929
    %931 = vrot.lane.b32.xlu0 %v923, 32
    %v932 = vpop.permute.xlu0 %931
    %933 = vrot.lane.b32.xlu0 %v918, 32
    %v934 = vpop.permute.xlu0 %933
    %935 = vrot.lane.b32.xlu0 %v920, 32
    %v936 = vpop.permute.xlu0 %935
    %937 = vrot.lane.b32.xlu0 %v922, 32
    %v938 = vpop.permute.xlu0 %937
    %939 = vrot.lane.b32.xlu0 %v924, 32
    %v940 = vpop.permute.xlu0 %939
    %vm941 = vcmp.lt.s32.totalorder %v874, 32
    %v942 = vsel %vm941, %v926, %v934
    %v943 = vsel %vm941, %v928, %v936
    %v944 = vsel %vm941, %v930, %v938
    %v945 = vsel %vm941, %v932, %v940
    %v946 = vsel %vm941, %v934, %v926
    %v947 = vsel %vm941, %v936, %v928
    %v948 = vsel %vm941, %v938, %v930
    %v949 = vsel %vm941, %v940, %v932
    %v950 = vmax.f32 %v917, %v946
    %v951 = vmax.f32 %v918, %v942
    %v952 = vmax.f32 %v919, %v947
    %v953 = vmax.f32 %v920, %v943
    %v954 = vmax.f32 %v921, %v948
    %v955 = vmax.f32 %v922, %v944
    %v956 = vmax.f32 %v923, %v949
    %v957 = vmax.f32 %v924, %v945
    %958 = vrot.lane.b32.xlu0 %v950, 64
    %v959 = vpop.permute.xlu0 %958
    %960 = vrot.lane.b32.xlu0 %v952, 64
    %v961 = vpop.permute.xlu0 %960
    %962 = vrot.lane.b32.xlu0 %v954, 64
    %v963 = vpop.permute.xlu0 %962
    %964 = vrot.lane.b32.xlu0 %v956, 64
    %v965 = vpop.permute.xlu0 %964
    %966 = vrot.lane.b32.xlu0 %v951, 64
    %v967 = vpop.permute.xlu0 %966
    %968 = vrot.lane.b32.xlu0 %v953, 64
    %v969 = vpop.permute.xlu0 %968
    %970 = vrot.lane.b32.xlu0 %v955, 64
    %v971 = vpop.permute.xlu0 %970
    %972 = vrot.lane.b32.xlu0 %v957, 64
    %v973 = vpop.permute.xlu0 %972
    %vm974 = vcmp.lt.s32.totalorder %v874, 64
    %v975 = vsel %vm974, %v959, %v967
    %v976 = vsel %vm974, %v961, %v969
    %v977 = vsel %vm974, %v963, %v971
    %v978 = vsel %vm974, %v965, %v973
    %v979 = vsel %vm974, %v967, %v959
    %v980 = vsel %vm974, %v969, %v961
    %v981 = vsel %vm974, %v971, %v963
    %v982 = vsel %vm974, %v973, %v965
    %v983 = vmax.f32 %v950, %v979
    %v984 = vmax.f32 %v951, %v975
    %v985 = vmax.f32 %v952, %v980
    %v986 = vmax.f32 %v953, %v976
    %v987 = vmax.f32 %v954, %v981
    %v988 = vmax.f32 %v955, %v977
    %v989 = vmax.f32 %v956, %v982
    %v990 = vmax.f32 %v957, %v978
    %v991 = vmax.f32 %v983, %v984
    %v992 = vmax.f32 %v985, %v986
    %v993 = vmax.f32 %v987, %v988
    %v994 = vmax.f32 %v989, %v990
    %v995 = vsub.f32 %v835, %v991
    %v996 = vsub.f32 %v837, %v991
    %v997 = vsub.f32 %v841, %v992
    %v998 = vsub.f32 %v843, %v992
    %v999 = vsub.f32 %v847, %v993
    %v1000 = vsub.f32 %v849, %v993
    %v1001 = vsub.f32 %v853, %v994
    %v1002 = vsub.f32 %v855, %v994
    %v1003 = vmul.f32 %v995, 1.442695
    %v1004 = vpow.pop %v1003
    %v1005 = vmul.f32 %v996, 1.442695
    %v1006 = vpow.pop %v1005
    %v1007 = vmul.f32 %v997, 1.442695
    %v1008 = vpow.pop %v1007
    %v1009 = vmul.f32 %v998, 1.442695
    %v1010 = vpow.pop %v1009
    %v1011 = vmul.f32 %v999, 1.442695
    %v1012 = vpow.pop %v1011
    %v1013 = vmul.f32 %v1000, 1.442695
    %v1014 = vpow.pop %v1013
    %v1015 = vmul.f32 %v1001, 1.442695
    %v1016 = vpow.pop %v1015
    %v1017 = vmul.f32 %v1002, 1.442695
    %v1018 = vpow.pop %v1017
    %v1019 = vld [vmem:[%s4] sm:$0xff]
    %v1020 = vld [vmem:[%s4 + $0x8] sm:$0xff]
    %v1021 = vld [vmem:[%s4 + $0x10] sm:$0xff]
    %v1022 = vld [vmem:[%s4 + $0x18] sm:$0xff]
    %v1023 = vld [vmem:[%s4 + $0x20] sm:$0xff]
    %v1024 = vld [vmem:[%s4 + $0x28] sm:$0xff]
    %v1025 = vld [vmem:[%s4 + $0x30] sm:$0xff]
    %v1026 = vld [vmem:[%s4 + $0x38] sm:$0xff]
    %v1027 = vmul.f32 %v1004, %v1019
    %v1028 = vmul.f32 %v1006, %v1020
    %v1029 = vmul.f32 %v1008, %v1021
    %v1030 = vmul.f32 %v1010, %v1022
    %v1031 = vmul.f32 %v1012, %v1023
    %v1032 = vmul.f32 %v1014, %v1024
    %v1033 = vmul.f32 %v1016, %v1025
    %v1034 = vmul.f32 %v1018, %v1026
    %1035 = vrot.lane.b32.xlu0 %v1027, 8
    %v1036 = vpop.permute.xlu0 %1035
    %1037 = vrot.lane.b32.xlu0 %v1029, 8
    %v1038 = vpop.permute.xlu0 %1037
    %1039 = vrot.lane.b32.xlu0 %v1031, 8
    %v1040 = vpop.permute.xlu0 %1039
    %1041 = vrot.lane.b32.xlu0 %v1033, 8
    %v1042 = vpop.permute.xlu0 %1041
    %1043 = vrot.lane.b32.xlu0 %v1028, 8
    %v1044 = vpop.permute.xlu0 %1043
    %1045 = vrot.lane.b32.xlu0 %v1030, 8
    %v1046 = vpop.permute.xlu0 %1045
    %1047 = vrot.lane.b32.xlu0 %v1032, 8
    %v1048 = vpop.permute.xlu0 %1047
    %1049 = vrot.lane.b32.xlu0 %v1034, 8
    %v1050 = vpop.permute.xlu0 %1049
    %v1051 = vsel %vm875, %v1036, %v1044
    %v1052 = vsel %vm875, %v1038, %v1046
    %v1053 = vsel %vm875, %v1040, %v1048
    %v1054 = vsel %vm875, %v1042, %v1050
    %v1055 = vsel %vm875, %v1044, %v1036
    %v1056 = vsel %vm875, %v1046, %v1038
    %v1057 = vsel %vm875, %v1048, %v1040
    %v1058 = vsel %vm875, %v1050, %v1042
    %v1059 = vadd.f32 %v1027, %v1055
    %v1060 = vadd.f32 %v1028, %v1051
    %v1061 = vadd.f32 %v1029, %v1056
    %v1062 = vadd.f32 %v1030, %v1052
    %v1063 = vadd.f32 %v1031, %v1057
    %v1064 = vadd.f32 %v1032, %v1053
    %v1065 = vadd.f32 %v1033, %v1058
    %v1066 = vadd.f32 %v1034, %v1054
    %1067 = vrot.lane.b32.xlu0 %v1059, 16
    %v1068 = vpop.permute.xlu0 %1067
    %1069 = vrot.lane.b32.xlu0 %v1061, 16
    %v1070 = vpop.permute.xlu0 %1069
    %1071 = vrot.lane.b32.xlu0 %v1063, 16
    %v1072 = vpop.permute.xlu0 %1071
    %1073 = vrot.lane.b32.xlu0 %v1065, 16
    %v1074 = vpop.permute.xlu0 %1073
    %1075 = vrot.lane.b32.xlu0 %v1060, 16
    %v1076 = vpop.permute.xlu0 %1075
    %1077 = vrot.lane.b32.xlu0 %v1062, 16
    %v1078 = vpop.permute.xlu0 %1077
    %1079 = vrot.lane.b32.xlu0 %v1064, 16
    %v1080 = vpop.permute.xlu0 %1079
    %1081 = vrot.lane.b32.xlu0 %v1066, 16
    %v1082 = vpop.permute.xlu0 %1081
    %v1083 = vsel %vm908, %v1068, %v1076
    %v1084 = vsel %vm908, %v1070, %v1078
    %v1085 = vsel %vm908, %v1072, %v1080
    %v1086 = vsel %vm908, %v1074, %v1082
    %v1087 = vsel %vm908, %v1076, %v1068
    %v1088 = vsel %vm908, %v1078, %v1070
    %v1089 = vsel %vm908, %v1080, %v1072
    %v1090 = vsel %vm908, %v1082, %v1074
    %v1091 = vadd.f32 %v1059, %v1087
    %v1092 = vadd.f32 %v1060, %v1083
    %v1093 = vadd.f32 %v1061, %v1088
    %v1094 = vadd.f32 %v1062, %v1084
    %v1095 = vadd.f32 %v1063, %v1089
    %v1096 = vadd.f32 %v1064, %v1085
    %v1097 = vadd.f32 %v1065, %v1090
    %v1098 = vadd.f32 %v1066, %v1086
    %1099 = vrot.lane.b32.xlu0 %v1091, 32
    %v1100 = vpop.permute.xlu0 %1099
    %1101 = vrot.lane.b32.xlu0 %v1093, 32
    %v1102 = vpop.permute.xlu0 %1101
    %1103 = vrot.lane.b32.xlu0 %v1095, 32
    %v1104 = vpop.permute.xlu0 %1103
    %1105 = vrot.lane.b32.xlu0 %v1097, 32
    %v1106 = vpop.permute.xlu0 %1105
    %1107 = vrot.lane.b32.xlu0 %v1092, 32
    %v1108 = vpop.permute.xlu0 %1107
    %1109 = vrot.lane.b32.xlu0 %v1094, 32
    %v1110 = vpop.permute.xlu0 %1109
    %1111 = vrot.lane.b32.xlu0 %v1096, 32
    %v1112 = vpop.permute.xlu0 %1111
    %1113 = vrot.lane.b32.xlu0 %v1098, 32
    %v1114 = vpop.permute.xlu0 %1113
    %v1115 = vsel %vm941, %v1100, %v1108
    %v1116 = vsel %vm941, %v1102, %v1110
    %v1117 = vsel %vm941, %v1104, %v1112
    %v1118 = vsel %vm941, %v1106, %v1114
    %v1119 = vsel %vm941, %v1108, %v1100
    %v1120 = vsel %vm941, %v1110, %v1102
    %v1121 = vsel %vm941, %v1112, %v1104
    %v1122 = vsel %vm941, %v1114, %v1106
    %v1123 = vadd.f32 %v1091, %v1119
    %v1124 = vadd.f32 %v1092, %v1115
    %v1125 = vadd.f32 %v1093, %v1120
    %v1126 = vadd.f32 %v1094, %v1116
    %v1127 = vadd.f32 %v1095, %v1121
    %v1128 = vadd.f32 %v1096, %v1117
    %v1129 = vadd.f32 %v1097, %v1122
    %v1130 = vadd.f32 %v1098, %v1118
    %1131 = vrot.lane.b32.xlu0 %v1123, 64
    %v1132 = vpop.permute.xlu0 %1131
    %1133 = vrot.lane.b32.xlu0 %v1125, 64
    %v1134 = vpop.permute.xlu0 %1133
    %1135 = vrot.lane.b32.xlu0 %v1127, 64
    %v1136 = vpop.permute.xlu0 %1135
    %1137 = vrot.lane.b32.xlu0 %v1129, 64
    %v1138 = vpop.permute.xlu0 %1137
    %1139 = vrot.lane.b32.xlu0 %v1124, 64
    %v1140 = vpop.permute.xlu0 %1139
    %1141 = vrot.lane.b32.xlu0 %v1126, 64
    %v1142 = vpop.permute.xlu0 %1141
    %1143 = vrot.lane.b32.xlu0 %v1128, 64
    %v1144 = vpop.permute.xlu0 %1143
    %1145 = vrot.lane.b32.xlu0 %v1130, 64
    %v1146 = vpop.permute.xlu0 %1145
    %v1147 = vsel %vm974, %v1132, %v1140
    %v1148 = vsel %vm974, %v1134, %v1142
    %v1149 = vsel %vm974, %v1136, %v1144
    %v1150 = vsel %vm974, %v1138, %v1146
    %v1151 = vsel %vm974, %v1140, %v1132
    %v1152 = vsel %vm974, %v1142, %v1134
    %v1153 = vsel %vm974, %v1144, %v1136
    %v1154 = vsel %vm974, %v1146, %v1138
    %v1155 = vadd.f32 %v1123, %v1151
    %v1156 = vadd.f32 %v1124, %v1147
    %v1157 = vadd.f32 %v1125, %v1152
    %v1158 = vadd.f32 %v1126, %v1148
    %v1159 = vadd.f32 %v1127, %v1153
    %v1160 = vadd.f32 %v1128, %v1149
    %v1161 = vadd.f32 %v1129, %v1154
    %v1162 = vadd.f32 %v1130, %v1150
    %v1163 = vadd.f32 %v1155, %v1156
    %v1164 = vadd.f32 %v1157, %v1158
    %v1165 = vadd.f32 %v1159, %v1160
    %v1166 = vadd.f32 %v1161, %v1162
    %v1167 = vsub.f32 1.0, %v1019
    %v1168 = vsub.f32 1.0, %v1020
    %v1169 = vsub.f32 1.0, %v1021
    %v1170 = vsub.f32 1.0, %v1022
    %v1171 = vsub.f32 1.0, %v1023
    %v1172 = vsub.f32 1.0, %v1024
    %v1173 = vsub.f32 1.0, %v1025
    %v1174 = vsub.f32 1.0, %v1026
    %v1175 = vadd.f32 %v1163, %v1167
    %v1176 = vadd.f32 %v1163, %v1168
    %v1177 = vadd.f32 %v1164, %v1169
    %v1178 = vadd.f32 %v1164, %v1170
    %v1179 = vadd.f32 %v1165, %v1171
    %v1180 = vadd.f32 %v1165, %v1172
    %v1181 = vadd.f32 %v1166, %v1173
    %v1182 = vadd.f32 %v1166, %v1174
    %v1183 = vrcp.pop %v1175
    %v1184 = vrcp.pop %v1176
    %v1185 = vrcp.pop %v1177
    %v1186 = vrcp.pop %v1178
    %v1187 = vrcp.pop %v1179
    %v1188 = vrcp.pop %v1180
    %v1189 = vrcp.pop %v1181
    %v1190 = vrcp.pop %v1182
    %v1191 = vmul.f32 %v1027, %v1183
    %v1192 = vmul.f32 %v1028, %v1184
    %v1193 = vmul.f32 %v1029, %v1185
    %v1194 = vmul.f32 %v1030, %v1186
    %v1195 = vmul.f32 %v1031, %v1187
    %v1196 = vmul.f32 %v1032, %v1188
    %v1197 = vmul.f32 %v1033, %v1189
    %v1198 = vmul.f32 %v1034, %v1190
    %1199 = vst [vmem:[#allocation4] sm:$0xff] %v1191
    %1200 = vst [vmem:[#allocation4 + $0x8] sm:$0xff] %v1192
    %1201 = vst [vmem:[#allocation4 + $0x10] sm:$0xff] %v1193
    %1202 = vst [vmem:[#allocation4 + $0x18] sm:$0xff] %v1194
    %1203 = vst [vmem:[#allocation4 + $0x20] sm:$0xff] %v1195
    %1204 = vst [vmem:[#allocation4 + $0x28] sm:$0xff] %v1196
    %1205 = vst [vmem:[#allocation4 + $0x30] sm:$0xff] %v1197
    %1206 = vst [vmem:[#allocation4 + $0x38] sm:$0xff] %v1198
    %1207 = vmatprep.subr.mxu0 0.0
    %1208 = vmatpush1.msra.mxu0 %v716
    %1209 = vmatprep.subr.mxu0 0.0
    %1210 = vmatpush1.msra.mxu0 %v717
    %1211 = vmatprep.subr.mxu0 0.0
    %1212 = vmatpush1.msra.mxu0 %v718
    %1213 = vmatprep.subr.mxu0 0.0
    %1214 = vmatpush1.msra.mxu0 %v719
    %1215 = vmatprep.subr.mxu0 0.0
    %1216 = vmatpush1.msra.mxu0 %v720
    %1217 = vmatprep.subr.mxu0 0.0
    %1218 = vmatpush1.msra.mxu0 %v721
    %1219 = vmatprep.subr.mxu0 0.0
    %1220 = vmatpush1.msra.mxu0 %v722
    %1221 = vmatprep.subr.mxu0 0.0
    %1222 = vmatpush1.msra.mxu0 %v723
    %1223 = vmatprep.subr.mxu0 0.0
    %1224 = vmatpush1.msra.mxu0 %v724
    %1225 = vmatprep.subr.mxu0 0.0
    %1226 = vmatpush1.msra.mxu0 %v725
    %1227 = vmatprep.subr.mxu0 0.0
    %1228 = vmatpush1.msra.mxu0 %v726
    %1229 = vmatprep.subr.mxu0 0.0
    %1230 = vmatpush1.msra.mxu0 %v727
    %1231 = vmatprep.subr.mxu0 0.0
    %1232 = vmatpush1.msra.mxu0 %v728
    %1233 = vmatprep.subr.mxu0 0.0
    %1234 = vmatpush1.msra.mxu0 %v729
    %1235 = vmatprep.subr.mxu0 0.0
    %1236 = vmatpush1.msra.mxu0 %v730
    %1237 = vmatprep.subr.mxu0 0.0
    %1238 = vmatpush1.msra.mxu0 %v731
    %1239 = vmatprep.subr.mxu0 0.0
    %1240 = vmatpush1.msra.mxu0 %v732
    %1241 = vmatprep.subr.mxu0 0.0
    %1242 = vmatpush1.msra.mxu0 %v733
    %1243 = vmatprep.subr.mxu0 0.0
    %1244 = vmatpush1.msra.mxu0 %v734
    %1245 = vmatprep.subr.mxu0 0.0
    %1246 = vmatpush1.msra.mxu0 %v735
    %1247 = vmatprep.subr.mxu0 0.0
    %1248 = vmatpush1.msra.mxu0 %v736
    %1249 = vmatprep.subr.mxu0 0.0
    %1250 = vmatpush1.msra.mxu0 %v737
    %1251 = vmatprep.subr.mxu0 0.0
    %1252 = vmatpush1.msra.mxu0 %v738
    %1253 = vmatprep.subr.mxu0 0.0
    %1254 = vmatpush1.msra.mxu0 %v739
    %1255 = vmatprep.subr.mxu0 0.0
    %1256 = vmatpush1.msra.mxu0 %v740
    %1257 = vmatprep.subr.mxu0 0.0
    %1258 = vmatpush1.msra.mxu0 %v741
    %1259 = vmatprep.subr.mxu0 0.0
    %1260 = vmatpush1.msra.mxu0 %v742
    %1261 = vmatprep.subr.mxu0 0.0
    %1262 = vmatpush1.msra.mxu0 %v743
    %1263 = vmatprep.subr.mxu0 0.0
    %1264 = vmatpush1.msra.mxu0 %v744
    %1265 = vmatprep.subr.mxu0 0.0
    %1266 = vmatpush1.msra.mxu0 %v745
    %1267 = vmatprep.subr.mxu0 0.0
    %1268 = vmatpush1.msra.mxu0 %v746
    %1269 = vmatprep.subr.mxu0 0.0
    %1270 = vmatpush1.msra.mxu0 %v747
    %1271 = vmatprep.mubr.f32.mxu0 %v1192
    %1272 = vmatmul.mubr.f32.gmra.mrb[0].mxu0 %v1191
    %v1273 = vpop.f32.mrb[0].mxu0
    %v1274 = vadd.f32 0.0, %v1273
    %v1275 = vpop.f32.mrb[0].mxu0
    %1276 = vmatprep.mubr.f32.mxu0 %v1194
    %1277 = vmatmul.mubr.f32.gmra.mrb[0].mxu0 %v1193
    %v1278 = vpop.f32.mrb[0].mxu0
    %v1279 = vadd.f32 0.0, %v1278
    %v1280 = vpop.f32.mrb[0].mxu0
    %1281 = vmatprep.mubr.f32.mxu0 %v1196
    %1282 = vmatmul.mubr.f32.gmra.mrb[0].mxu0 %v1195
    %v1283 = vpop.f32.mrb[0].mxu0
    %v1284 = vadd.f32 0.0, %v1283
    %v1285 = vpop.f32.mrb[0].mxu0
    %1286 = vmatprep.mubr.f32.mxu0 %v1198
    %1287 = vmatmul.mubr.f32.gmra.mrb[0].mxu0 %v1197
    %v1288 = vpop.f32.mrb[0].mxu0
    %v1289 = vadd.f32 0.0, %v1288
    %v1290 = vpop.f32.mrb[0].mxu0
    %1291 = vdwg.mxu0
    %v1292 = vld [vmem:[%s13] sm:$0xff]
    %v1293 = vld [vmem:[%s13 + $0x8] sm:$0xff]
    %v1294 = vld [vmem:[%s13 + $0x10] sm:$0xff]
    %v1295 = vld [vmem:[%s13 + $0x18] sm:$0xff]
    %v1296 = vld [vmem:[%s14] sm:$0x1]
    %v1298 = vlaneseq
    %v1299 = vshrl.u32 %v1298, 7
    %v1300 = vsub.s32 0, %v1299
    %v1301 = vrot.slane %v1296, %v1300
    %v1304 = vsel %vm69, %v1274, 0
    %v1307 = vsel %vm69, %v1279, 0
    %v1310 = vsel %vm69, %v1284, 0
    %v1313 = vsel %vm69, %v1289, 0
    %1315 = vmatprep.subr.mxu0 0.0
    %1316 = vmatpush1.msra.mxu0 %v1292
    %1317 = vmatprep.subr.mxu0 0.0
    %1318 = vmatpush1.msra.mxu0 %v1293
    %1319 = vmatprep.subr.mxu0 0.0
    %1320 = vmatpush1.msra.mxu0 %v1294
    %1321 = vmatprep.subr.mxu0 0.0
    %1322 = vmatpush1.msra.mxu0 %v1295
    %1323 = vmatprep.subr.mxu0 0.0
    %1324 = vmatpush1.msra.mxu0 0.0
    %1325 = vmatprep.subr.mxu0 0.0
    %1326 = vmatpush1.msra.mxu0 0.0
    %1327 = vmatprep.subr.mxu0 0.0
    %1328 = vmatpush1.msra.mxu0 0.0
    %1329 = vmatprep.subr.mxu0 0.0
    %1330 = vmatpush1.msra.mxu0 0.0
    %1331 = vmatprep.subr.mxu0 0.0
    %1332 = vmatpush1.msra.mxu0 0.0
    %1333 = vmatprep.subr.mxu0 0.0
    %1334 = vmatpush1.msra.mxu0 0.0
    %1335 = vmatprep.subr.mxu0 0.0
    %1336 = vmatpush1.msra.mxu0 0.0
    %1337 = vmatprep.subr.mxu0 0.0
    %1338 = vmatpush1.msra.mxu0 0.0
    %1339 = vmatprep.subr.mxu0 0.0
    %1340 = vmatpush1.msra.mxu0 0.0
    %1341 = vmatprep.subr.mxu0 0.0
    %1342 = vmatpush1.msra.mxu0 0.0
    %1343 = vmatprep.subr.mxu0 0.0
    %1344 = vmatpush1.msra.mxu0 0.0
    %1345 = vmatprep.subr.mxu0 0.0
    %1346 = vmatpush1.msra.mxu0 0.0
    %1347 = vmatprep.subr.mxu0 0.0
    %1348 = vmatpush1.msra.mxu0 0.0
    %1349 = vmatprep.subr.mxu0 0.0
    %1350 = vmatpush1.msra.mxu0 0.0
    %1351 = vmatprep.subr.mxu0 0.0
    %1352 = vmatpush1.msra.mxu0 0.0
    %1353 = vmatprep.subr.mxu0 0.0
    %1354 = vmatpush1.msra.mxu0 0.0
    %1355 = vmatprep.subr.mxu0 0.0
    %1356 = vmatpush1.msra.mxu0 0.0
    %1357 = vmatprep.subr.mxu0 0.0
    %1358 = vmatpush1.msra.mxu0 0.0
    %1359 = vmatprep.subr.mxu0 0.0
    %1360 = vmatpush1.msra.mxu0 0.0
    %1361 = vmatprep.subr.mxu0 0.0
    %1362 = vmatpush1.msra.mxu0 0.0
    %1363 = vmatprep.subr.mxu0 0.0
    %1364 = vmatpush1.msra.mxu0 0.0
    %1365 = vmatprep.subr.mxu0 0.0
    %1366 = vmatpush1.msra.mxu0 0.0
    %1367 = vmatprep.subr.mxu0 0.0
    %1368 = vmatpush1.msra.mxu0 0.0
    %1369 = vmatprep.subr.mxu0 0.0
    %1370 = vmatpush1.msra.mxu0 0.0
    %1371 = vmatprep.subr.mxu0 0.0
    %1372 = vmatpush1.msra.mxu0 0.0
    %1373 = vmatprep.subr.mxu0 0.0
    %1374 = vmatpush1.msra.mxu0 0.0
    %1375 = vmatprep.subr.mxu0 0.0
    %1376 = vmatpush1.msra.mxu0 0.0
    %1377 = vmatprep.subr.mxu0 0.0
    %1378 = vmatpush1.msra.mxu0 0.0
    %1379 = vmatprep.mubr.f32.mxu0 0.0
    %1380 = vmatmul.mubr.f32.gmra.mrb[0].mxu0 %v1304
    %v1381 = vpop.f32.mrb[0].mxu0
    %v1382 = vadd.f32 %v1301, %v1381
    %v1383 = vpop.f32.mrb[0].mxu0
    %1384 = vmatprep.mubr.f32.mxu0 0.0
    %1385 = vmatmul.mubr.f32.gmra.mrb[0].mxu0 %v1307
    %v1386 = vpop.f32.mrb[0].mxu0
    %v1387 = vadd.f32 %v1301, %v1386
    %v1388 = vpop.f32.mrb[0].mxu0
    %1389 = vmatprep.mubr.f32.mxu0 0.0
    %1390 = vmatmul.mubr.f32.gmra.mrb[0].mxu0 %v1310
    %v1391 = vpop.f32.mrb[0].mxu0
    %v1392 = vadd.f32 %v1301, %v1391
    %v1393 = vpop.f32.mrb[0].mxu0
    %1394 = vmatprep.mubr.f32.mxu0 0.0
    %1395 = vmatmul.mubr.f32.gmra.mrb[0].mxu0 %v1313
    %v1396 = vpop.f32.mrb[0].mxu0
    %v1397 = vadd.f32 %v1301, %v1396
    %v1398 = vpop.f32.mrb[0].mxu0
    %1399 = vdwg.mxu0
    %1400 = vst [vmem:[#allocation2] sm:$0xff] %v1382
    %1401 = vst [vmem:[#allocation2 + $0x8] sm:$0xff] %v1387
    %1402 = vst [vmem:[#allocation2 + $0x10] sm:$0xff] %v1392
    %1403 = vst [vmem:[#allocation2 + $0x18] sm:$0xff] %v1397
    // Predicated region
    $region62: #{tpu_custom_call.1} parent=1 // pred_check
      _
    $region63: #{tpu_custom_call.1} parent=1 // pred_check_branch
      %1405 = sbr.rel (0) target = $region65
    $region64: #{tpu_custom_call.1} parent=1 // pred_region
      %s1407 = ssub.s32 512, 512
      %1408 = vsyncadd [#allocation3], %s1407
      %s1409 = sshll.u32 [#allocation2], 4
      %s1410 = int_to_ptr.vmem [resolvable:$true] %s1409
      %1415 = dma.vmem_to_hbm [thread:$0]  %s1410, 512, %s15, [#allocation3], 128, 128, 8
    $region65: #{tpu_custom_call.1} parent=1 // pred_fallthru
      _
    // Predicated region
    $region66: #{tpu_custom_call.1} parent=1 // pred_check
      _
    $region67: #{tpu_custom_call.1} parent=1 // pred_check_branch
      %1417 = sbr.rel (0) target = $region69
    $region68: #{tpu_custom_call.1} parent=1 // pred_region
      %s1419 = ssub.s32 1024, 1024
      %1420 = vsyncadd [#allocation5], %s1419
      %s1421 = sshll.u32 [#allocation4], 4
      %s1422 = int_to_ptr.vmem [resolvable:$true] %s1421
      %1427 = dma.vmem_to_hbm [thread:$0]  %s1422, 1024, %s16, [#allocation5], 256, 256, 16
    $region69: #{tpu_custom_call.1} parent=1 // pred_fallthru
      _
    // Predicated region
    $region70: #{tpu_custom_call.1} parent=1 // pred_check
      _
    $region71: #{tpu_custom_call.1} parent=1 // pred_check_branch
      %1429 = sbr.rel (0) target = $region73
    $region72: #{tpu_custom_call.1} parent=1 // pred_region
      %1430 = dma.done [#allocation3], 512
    $region73: #{tpu_custom_call.1} parent=1 // pred_fallthru
      _
    // Predicated region
    $region74: #{tpu_custom_call.1} parent=1 // pred_check
      _
    $region75: #{tpu_custom_call.1} parent=1 // pred_check_branch
      %1432 = sbr.rel (0) target = $region77
    $region76: #{tpu_custom_call.1} parent=1 // pred_region
      %1433 = dma.done [#allocation5], 1024
    $region77: #{tpu_custom_call.1} parent=1 // pred_fallthru
      _
    %1434 = vsyncpa [#allocation3], 1
    %1435 = vsyncpa [#allocation5], 1

</llo_original>
